<compile_context>
chip_gen: v7x
topology: tpu7x:2x2x1
jax: 0.10.0
libtpu: 0.0.40
codegen_flags: <defaults>
</compile_context>

<pallas_src>
import functools

import jax
import jax.numpy as jnp
from jax.experimental import pallas as pl
from jax.experimental.pallas import tpu as pltpu


_VMEM_LIMIT = 32 * 1024 * 1024    # explicit scoped-VMEM limit (safe on v5e/v6e/v7x)
_VMEM_BUDGET = 20 * 1024 * 1024   # tile-selection budget (headroom for v7x's 64 MiB)


def _round_up(x, m):
    return (x + m - 1) // m * m


# ---------------------------------------------------------------------------
# Fused kernel: space-to-depth'd input tile  ->  9 shifted MXU dots
#               + bias + LeakyReLU(0.2), single store.
# ---------------------------------------------------------------------------
def _fused_s2d_conv_kernel(x_ref, w_ref, b_ref, o_ref, *, Ws, DW, n_taps,
                           apply_lrelu):
    # x_ref: (1, Mx, C4)  bf16  flattened (row-major) s2d image + slack rows
    # w_ref: (n_taps, C4, tn) bf16     b_ref: (1, tn) f32
    # o_ref: (1, Lm_pad, tn)           Lm_pad = rows of (Ho x Ws) output slab
    lm = o_ref.shape[1]
    tn = o_ref.shape[2]
    acc = jnp.zeros((lm, tn), jnp.float32)
    for t in range(n_taps):                       # static unroll: 9 MXU dots
        dh, dw = divmod(t, DW)
        ofs = dh * Ws + dw                        # shifted flat view of the image
        xs = x_ref[0, pl.ds(ofs, lm), :]          # (Lm_pad, C4) bf16
        acc = acc + jnp.dot(xs, w_ref[t], preferred_element_type=jnp.float32)
    acc = acc + b_ref[...]                        # bias in f32, once
    if apply_lrelu:
        acc = jnp.where(acc > 0, acc, 0.2 * acc)  # LeakyReLU(0.2)
    o_ref[0] = acc.astype(o_ref.dtype)


def _fused_footprint(Mx, C4, Lm_pad, n_taps, tn, out_bytes):
    x_b = 2 * Mx * C4 * 2                 # double-buffered bf16 input tile
    w_b = 2 * n_taps * C4 * tn * 2        # double-buffered bf16 weights
    o_b = 2 * Lm_pad * tn * out_bytes     # double-buffered output tile
    a_b = Lm_pad * tn * 4                 # f32 accumulator (vregs / VMEM)
    return x_b + w_b + o_b + a_b


def _pick_tn(Cn_pad, Mx, C4, Lm_pad, n_taps, out_bytes):
    # Largest multiple of 128 dividing Cn_pad that fits the VMEM budget, so the
    # activation tile is streamed from HBM exactly once when possible.
    nb = Cn_pad // 128
    best = 128
    for d in range(1, nb + 1):
        if nb % d:
            continue
        tn = d * 128
        if _fused_footprint(Mx, C4, Lm_pad, n_taps, tn, out_bytes) <= _VMEM_BUDGET:
            best = tn
    return best


def _fused_s2d_conv(x_nhwc, w_oihw, bias, *, padding, Ho, Wo, apply_lrelu,
                    out_dtype):
    """Fused stride-2 conv: s2d relayout (input-sized) + single Pallas kernel."""
    N, H, W, Cin = x_nhwc.shape
    Cout, _, KH, KW = w_oihw.shape
    DH, DW = (KH + 1) // 2, (KW + 1) // 2         # 5x5 -> 3x3 taps per axis
    Hs, Ws = Ho + DH - 1, Wo + DW - 1             # s2d spatial extents needed
    C4 = 4 * Cin                                  # 2x2 phases folded to channels
    n_taps = DH * DW
    Cn_pad = _round_up(Cout, 128)                 # lane-dense output
    Lm = Ho * Ws                                  # full-width output rows
    Lm_pad = _round_up(Lm, 8)
    Mx = _round_up((DH - 1) * Ws + (DW - 1) + Lm_pad, 8)   # rows incl. slack
    out_bytes = jnp.dtype(out_dtype).itemsize

    # Zero-pad + space-to-depth (one input-sized relayout, ~1/6 of im2col bytes).
    xp = jnp.pad(x_nhwc, ((0, 0),
                          (padding, 2 * Hs - H - padding),
                          (padding, 2 * Ws - W - padding),
                          (0, 0)))
    xs2d = xp.reshape(N, Hs, 2, Ws, 2, Cin).transpose(0, 1, 3, 2, 4, 5)
    xs2d = xs2d.reshape(N, Hs * Ws, C4)
    xs2d = jnp.pad(xs2d, ((0, 0), (0, Mx - Hs * Ws), (0, 0)))   # slack rows (zeros)

    # Weight remap (tiny): (Cout,Cin,KH,KW) -> (n_taps, C4, Cn_pad), channel
    # order matching the s2d layout; relayout the weight, never the activations.
    w6 = jnp.pad(w_oihw, ((0, 0), (0, 0), (0, 2 * DH - KH), (0, 2 * DW - KW)))
    w_t = w6.reshape(Cout, Cin, DH, 2, DW, 2).transpose(2, 4, 3, 5, 1, 0)
    w_t = w_t.reshape(n_taps, C4, Cout).astype(jnp.bfloat16)
    w_t = jnp.pad(w_t, ((0, 0), (0, 0), (0, Cn_pad - Cout)))
    b_p = jnp.pad(bias.astype(jnp.float32), (0, Cn_pad - Cout)).reshape(1, Cn_pad)

    tn = _pick_tn(Cn_pad, Mx, C4, Lm_pad, n_taps, out_bytes)
    if N == 1 and Cn_pad // tn == 1 and Cn_pad % 256 == 0:
        tn = Cn_pad // 2    # leave >=2 parallel blocks so both v7x TCs get work

    out = pl.pallas_call(
        functools.partial(_fused_s2d_conv_kernel, Ws=Ws, DW=DW, n_taps=n_taps,
                          apply_lrelu=apply_lrelu),
        out_shape=jax.ShapeDtypeStruct((N, Lm_pad, Cn_pad), out_dtype),
        grid_spec=pltpu.PrefetchScalarGridSpec(
            num_scalar_prefetch=0,
            grid=(N, Cn_pad // tn),
            in_specs=[
                pl.BlockSpec((1, Mx, C4), lambda n, j: (n, 0, 0)),        # image
                pl.BlockSpec((n_taps, C4, tn), lambda n, j: (0, 0, j)),   # weights
                pl.BlockSpec((1, tn), lambda n, j: (0, j)),               # bias
            ],
            out_specs=pl.BlockSpec((1, Lm_pad, tn), lambda n, j: (n, 0, j)),
        ),
        compiler_params=pltpu.CompilerParams(
            dimension_semantics=("parallel", "parallel"),
            vmem_limit_bytes=_VMEM_LIMIT),
    )(xs2d, w_t, b_p)

    # Drop the Ws-Wo full-width slack columns and the Cout lane padding.
    out = out[:, :Lm].reshape(N, Ho, Ws, Cn_pad)[:, :, :Wo, :Cout]
    return out


# ---------------------------------------------------------------------------
# Fallback: improved im2col + single-K-step fused matmul/bias/activation.
# Used only when the fused path cannot hold a whole image in VMEM or stride!=2.
# TODO(synk): replace with a halo-tiled (manual-DMA) row-blocked fused kernel
# so very large images also avoid the im2col expansion.
# ---------------------------------------------------------------------------
def _im2col_matmul_kernel(x_ref, w_ref, b_ref, o_ref, *, apply_lrelu):
    acc = jnp.dot(x_ref[...], w_ref[...], preferred_element_type=jnp.float32)
    acc = acc + b_ref[...]
    if apply_lrelu:
        acc = jnp.where(acc > 0, acc, 0.2 * acc)
    o_ref[...] = acc.astype(o_ref.dtype)


def _im2col_conv(x_nhwc, w_oihw, bias, *, stride, padding, Ho, Wo, apply_lrelu,
                 out_dtype):
    N, H, W, Cin = x_nhwc.shape
    Cout, _, KH, KW = w_oihw.shape
    K = KH * KW * Cin
    M = N * Ho * Wo
    Cn_pad = _round_up(Cout, 128)
    out_bytes = jnp.dtype(out_dtype).itemsize

    xp = jnp.pad(x_nhwc, ((0, 0), (padding, padding), (padding, padding), (0, 0)))
    cols = [xp[:, kh:kh + stride * (Ho - 1) + 1:stride,
               kw:kw + stride * (Wo - 1) + 1:stride, :]
            for kh in range(KH) for kw in range(KW)]
    # (N,Ho,Wo,KH*KW,Cin) -> (M, K) with K ordered (kh,kw,c): no transpose of the
    # big patches tensor -- the tiny weight is reordered to match instead.
    patches = jnp.stack(cols, axis=3).reshape(M, K)

    w_mat = jnp.transpose(w_oihw, (0, 2, 3, 1)).reshape(Cout, K).T
    w_p = jnp.pad(w_mat.astype(jnp.bfloat16), ((0, 0), (0, Cn_pad - Cout)))
    b_p = jnp.pad(bias.astype(jnp.float32), (0, Cn_pad - Cout)).reshape(1, Cn_pad)

    # Single K step with full-K blocks (no K padding of patches); tn covers as
    # much of Cout as sensible; tm sized to the VMEM budget.
    nb = Cn_pad // 128
    tn = 128
    for d in range(1, nb + 1):
        if nb % d == 0 and 2 * K * d * 128 * 2 <= (4 << 20):
            tn = d * 128
    tm = 1024
    while tm > 8 and (2 * tm * K * 2 + 2 * K * tn * 2
                      + 2 * tm * tn * out_bytes) > _VMEM_BUDGET:
        tm //= 2
    tm = max(tm, 8)
    M_pad = _round_up(M, tm)
    patches = jnp.pad(patches, ((0, M_pad - M), (0, 0)))

    out = pl.pallas_call(
        functools.partial(_im2col_matmul_kernel, apply_lrelu=apply_lrelu),
        out_shape=jax.ShapeDtypeStruct((M_pad, Cn_pad), out_dtype),
        grid_spec=pltpu.PrefetchScalarGridSpec(
            num_scalar_prefetch=0,
            grid=(M_pad // tm, Cn_pad // tn),
            in_specs=[
                pl.BlockSpec((tm, K), lambda i, j: (i, 0)),
                pl.BlockSpec((K, tn), lambda i, j: (0, j)),
                pl.BlockSpec((1, tn), lambda i, j: (0, j)),
            ],
            out_specs=pl.BlockSpec((tm, tn), lambda i, j: (i, j)),
        ),
        compiler_params=pltpu.CompilerParams(
            dimension_semantics=("parallel", "parallel"),
            vmem_limit_bytes=_VMEM_LIMIT),
    )(patches, w_p, b_p)

    return out[:M, :Cout].reshape(N, Ho, Wo, Cout)


# ---------------------------------------------------------------------------
# SpecConv2d forward
# ---------------------------------------------------------------------------
def spec_conv2d_forward(w_oihw, bias, x_nchw, *, stride=2, padding=2,
                        apply_lrelu=True, out_dtype=jnp.float32):
    N, Cin, H, W = x_nchw.shape
    Cout, Cin_w, KH, KW = w_oihw.shape
    assert Cin == Cin_w
    Ho = (H + 2 * padding - KH) // stride + 1
    Wo = (W + 2 * padding - KW) // stride + 1

    # TODO(synk): keep activations NHWC end-to-end in the surrounding model to
    # drop these two full HBM relayout passes (NCHW<->NHWC); kept here to match
    # the PyTorch module's NCHW interface.  Inputs are intentionally cast to
    # bf16 (MXU inputs) with f32 accumulation.
    x_nhwc = jnp.transpose(x_nchw, (0, 2, 3, 1)).astype(jnp.bfloat16)

    use_fused = (stride == 2)
    if use_fused:
        DH, DW = (KH + 1) // 2, (KW + 1) // 2
        Hs, Ws = Ho + DH - 1, Wo + DW - 1
        use_fused = (2 * Hs - H - padding >= 0) and (2 * Ws - W - padding >= 0)
        if use_fused:
            C4 = 4 * Cin
            Lm_pad = _round_up(Ho * Ws, 8)
            Mx = _round_up((DH - 1) * Ws + (DW - 1) + Lm_pad, 8)
            out_bytes = jnp.dtype(out_dtype).itemsize
            use_fused = _fused_footprint(Mx, C4, Lm_pad, DH * DW, 128,
                                         out_bytes) <= _VMEM_BUDGET

    if use_fused:
        out_nhwc = _fused_s2d_conv(x_nhwc, w_oihw, bias, padding=padding,
                                   Ho=Ho, Wo=Wo, apply_lrelu=apply_lrelu,
                                   out_dtype=out_dtype)
    else:
        out_nhwc = _im2col_conv(x_nhwc, w_oihw, bias, stride=stride,
                                padding=padding, Ho=Ho, Wo=Wo,
                                apply_lrelu=apply_lrelu, out_dtype=out_dtype)

    return jnp.transpose(out_nhwc, (0, 3, 1, 2))   # NHWC -> NCHW


# ---------------------------------------------------------------------------
# Spectral normalization (parameter re-parameterization, power iteration)
# ---------------------------------------------------------------------------
def spectral_normalize(w_oihw, key, n_power_iterations=1, eps=1e-12):
    # TODO(synk): torch.nn.utils.spectral_norm persists `u` across forward
    # passes; here a fresh `u` is drawn (fine for a demo, not bit-matching a
    # trained checkpoint).
    cout = w_oihw.shape[0]
    w_mat = w_oihw.reshape(cout, -1)
    u = jax.random.normal(key, (cout,), jnp.float32)
    u = u / (jnp.linalg.norm(u) + eps)
    v = w_mat.T @ u
    v = v / (jnp.linalg.norm(v) + eps)
    for _ in range(max(n_power_iterations - 1, 0)):
        u = w_mat @ v
        u = u / (jnp.linalg.norm(u) + eps)
        v = w_mat.T @ u
        v = v / (jnp.linalg.norm(v) + eps)
    u = w_mat @ v
    u = u / (jnp.linalg.norm(u) + eps)
    sigma = u @ (w_mat @ v)
    return w_oihw / sigma


if __name__ == "__main__":
    key = jax.random.PRNGKey(0)
    kx, kw, kb, ku = jax.random.split(key, 4)

    # Small SpecConv2d: 4 -> 64 channels, 16x16 input, k=5, s=2, p=2.
    N, Cin, H, W = 2, 4, 16, 16
    Cout, KH, KW = 64, 5, 5

    x = jax.random.normal(kx, (N, Cin, H, W), jnp.float32)

    fan_in = Cin * KH * KW
    bound = 1.0 / float(fan_in) ** 0.5
    w = jax.random.uniform(kw, (Cout, Cin, KH, KW), jnp.float32, -bound, bound)
    b = jax.random.uniform(kb, (Cout,), jnp.float32, -bound, bound)
    w_sn = spectral_normalize(w, ku)      # spectral_norm reparameterization

    out = spec_conv2d_forward(w_sn, b, x)
    out = jax.block_until_ready(out)

    # Pure-JAX reference (f32 conv + bias + LeakyReLU) for a tolerance check.
    ref = jax.lax.conv_general_dilated(
        x, w_sn, window_strides=(2, 2), padding=((2, 2), (2, 2)),
        dimension_numbers=("NCHW", "OIHW", "NCHW"))
    ref = ref + b.reshape(1, Cout, 1, 1)
    ref = jnp.where(ref > 0, ref, 0.2 * ref)

    Ho = (H + 2 * 2 - KH) // 2 + 1
    Wo = (W + 2 * 2 - KW) // 2 + 1
    assert out.shape == (N, Cout, Ho, Wo), out.shape
    assert bool(jnp.all(jnp.isfinite(out)))
    rel_err = float(jnp.max(jnp.abs(out - ref)) / (jnp.max(jnp.abs(ref)) + 1e-6))
    assert rel_err < 5e-2, rel_err        # bf16 MXU inputs, f32 accumulation
    print("KERNEL_OK")
</pallas_src>

<mosaic_0001>
module attributes {stable_mosaic.version = 11 : i64} {
  func.func @_fused_s2d_conv_kernel(%arg0: i32, %arg1: i32, %arg2: memref<1x104x16xbf16, #tpu.memory_space<vmem>>, %arg3: memref<9x16x128xbf16, #tpu.memory_space<vmem>>, %arg4: memref<1x128xf32, #tpu.memory_space<vmem>>, %arg5: memref<1x80x128xf32, #tpu.memory_space<vmem>>) attributes {dimension_semantics = [#tpu.dimension_semantics<parallel>, #tpu.dimension_semantics<parallel>], iteration_bounds = array<i64: 2, 1>, scalar_prefetch = 0 : i64, scratch_operands = 0 : i64, tpu.core_type = #tpu.core_type<tc>, window_params = [{transform_indices = @transform_0, window_bounds = array<i64: 1, 104, 16>}, {transform_indices = @transform_1, window_bounds = array<i64: 9, 16, 128>}, {transform_indices = @transform_2, window_bounds = array<i64: 1, 128>}, {transform_indices = @transform_3, window_bounds = array<i64: 1, 80, 128>}]} {
    %cst = arith.constant 0.000000e+00 : f32
    %0 = vector.broadcast %cst : f32 to vector<80x128xf32>
    %c0 = arith.constant 0 : index
    %c0_0 = arith.constant 0 : index
    %c0_1 = arith.constant 0 : index
    %1 = vector.load %arg2[%c0, %c0_0, %c0_1] : memref<1x104x16xbf16, #tpu.memory_space<vmem>>, vector<1x80x16xbf16>
    %2 = vector.shape_cast %1 : vector<1x80x16xbf16> to vector<80x16xbf16>
    %c0_2 = arith.constant 0 : index
    %c0_3 = arith.constant 0 : index
    %c0_4 = arith.constant 0 : index
    %3 = vector.load %arg3[%c0_2, %c0_3, %c0_4] : memref<9x16x128xbf16, #tpu.memory_space<vmem>>, vector<1x16x128xbf16>
    %4 = vector.shape_cast %3 : vector<1x16x128xbf16> to vector<16x128xbf16>
    %cst_5 = arith.constant dense<0.000000e+00> : vector<80x128xf32>
    %5 = tpu.matmul %2, %4, %cst_5 {dimension_numbers = #tpu.dot_dimension_numbers<[1], [0], [0], [1], [0, 0, 1, 1], [], []>} : vector<80x16xbf16>, vector<16x128xbf16>, vector<80x128xf32> -> vector<80x128xf32>
    %6 = arith.addf %0, %5 : vector<80x128xf32>
    %c0_6 = arith.constant 0 : index
    %c1 = arith.constant 1 : index
    %c0_7 = arith.constant 0 : index
    %7 = vector.load %arg2[%c0_6, %c1, %c0_7] : memref<1x104x16xbf16, #tpu.memory_space<vmem>>, vector<1x80x16xbf16>
    %8 = vector.shape_cast %7 : vector<1x80x16xbf16> to vector<80x16xbf16>
    %c1_8 = arith.constant 1 : index
    %c0_9 = arith.constant 0 : index
    %c0_10 = arith.constant 0 : index
    %9 = vector.load %arg3[%c1_8, %c0_9, %c0_10] : memref<9x16x128xbf16, #tpu.memory_space<vmem>>, vector<1x16x128xbf16>
    %10 = vector.shape_cast %9 : vector<1x16x128xbf16> to vector<16x128xbf16>
    %cst_11 = arith.constant dense<0.000000e+00> : vector<80x128xf32>
    %11 = tpu.matmul %8, %10, %cst_11 {dimension_numbers = #tpu.dot_dimension_numbers<[1], [0], [0], [1], [0, 0, 1, 1], [], []>} : vector<80x16xbf16>, vector<16x128xbf16>, vector<80x128xf32> -> vector<80x128xf32>
    %12 = arith.addf %6, %11 : vector<80x128xf32>
    %c0_12 = arith.constant 0 : index
    %c2 = arith.constant 2 : index
    %c0_13 = arith.constant 0 : index
    %13 = vector.load %arg2[%c0_12, %c2, %c0_13] : memref<1x104x16xbf16, #tpu.memory_space<vmem>>, vector<1x80x16xbf16>
    %14 = vector.shape_cast %13 : vector<1x80x16xbf16> to vector<80x16xbf16>
    %c2_14 = arith.constant 2 : index
    %c0_15 = arith.constant 0 : index
    %c0_16 = arith.constant 0 : index
    %15 = vector.load %arg3[%c2_14, %c0_15, %c0_16] : memref<9x16x128xbf16, #tpu.memory_space<vmem>>, vector<1x16x128xbf16>
    %16 = vector.shape_cast %15 : vector<1x16x128xbf16> to vector<16x128xbf16>
    %cst_17 = arith.constant dense<0.000000e+00> : vector<80x128xf32>
    %17 = tpu.matmul %14, %16, %cst_17 {dimension_numbers = #tpu.dot_dimension_numbers<[1], [0], [0], [1], [0, 0, 1, 1], [], []>} : vector<80x16xbf16>, vector<16x128xbf16>, vector<80x128xf32> -> vector<80x128xf32>
    %18 = arith.addf %12, %17 : vector<80x128xf32>
    %c0_18 = arith.constant 0 : index
    %c10 = arith.constant 10 : index
    %c0_19 = arith.constant 0 : index
    %19 = vector.load %arg2[%c0_18, %c10, %c0_19] : memref<1x104x16xbf16, #tpu.memory_space<vmem>>, vector<1x80x16xbf16>
    %20 = vector.shape_cast %19 : vector<1x80x16xbf16> to vector<80x16xbf16>
    %c3 = arith.constant 3 : index
    %c0_20 = arith.constant 0 : index
    %c0_21 = arith.constant 0 : index
    %21 = vector.load %arg3[%c3, %c0_20, %c0_21] : memref<9x16x128xbf16, #tpu.memory_space<vmem>>, vector<1x16x128xbf16>
    %22 = vector.shape_cast %21 : vector<1x16x128xbf16> to vector<16x128xbf16>
    %cst_22 = arith.constant dense<0.000000e+00> : vector<80x128xf32>
    %23 = tpu.matmul %20, %22, %cst_22 {dimension_numbers = #tpu.dot_dimension_numbers<[1], [0], [0], [1], [0, 0, 1, 1], [], []>} : vector<80x16xbf16>, vector<16x128xbf16>, vector<80x128xf32> -> vector<80x128xf32>
    %24 = arith.addf %18, %23 : vector<80x128xf32>
    %c0_23 = arith.constant 0 : index
    %c11 = arith.constant 11 : index
    %c0_24 = arith.constant 0 : index
    %25 = vector.load %arg2[%c0_23, %c11, %c0_24] : memref<1x104x16xbf16, #tpu.memory_space<vmem>>, vector<1x80x16xbf16>
    %26 = vector.shape_cast %25 : vector<1x80x16xbf16> to vector<80x16xbf16>
    %c4 = arith.constant 4 : index
    %c0_25 = arith.constant 0 : index
    %c0_26 = arith.constant 0 : index
    %27 = vector.load %arg3[%c4, %c0_25, %c0_26] : memref<9x16x128xbf16, #tpu.memory_space<vmem>>, vector<1x16x128xbf16>
    %28 = vector.shape_cast %27 : vector<1x16x128xbf16> to vector<16x128xbf16>
    %cst_27 = arith.constant dense<0.000000e+00> : vector<80x128xf32>
    %29 = tpu.matmul %26, %28, %cst_27 {dimension_numbers = #tpu.dot_dimension_numbers<[1], [0], [0], [1], [0, 0, 1, 1], [], []>} : vector<80x16xbf16>, vector<16x128xbf16>, vector<80x128xf32> -> vector<80x128xf32>
    %30 = arith.addf %24, %29 : vector<80x128xf32>
    %c0_28 = arith.constant 0 : index
    %c12 = arith.constant 12 : index
    %c0_29 = arith.constant 0 : index
    %31 = vector.load %arg2[%c0_28, %c12, %c0_29] : memref<1x104x16xbf16, #tpu.memory_space<vmem>>, vector<1x80x16xbf16>
    %32 = vector.shape_cast %31 : vector<1x80x16xbf16> to vector<80x16xbf16>
    %c5 = arith.constant 5 : index
    %c0_30 = arith.constant 0 : index
    %c0_31 = arith.constant 0 : index
    %33 = vector.load %arg3[%c5, %c0_30, %c0_31] : memref<9x16x128xbf16, #tpu.memory_space<vmem>>, vector<1x16x128xbf16>
    %34 = vector.shape_cast %33 : vector<1x16x128xbf16> to vector<16x128xbf16>
    %cst_32 = arith.constant dense<0.000000e+00> : vector<80x128xf32>
    %35 = tpu.matmul %32, %34, %cst_32 {dimension_numbers = #tpu.dot_dimension_numbers<[1], [0], [0], [1], [0, 0, 1, 1], [], []>} : vector<80x16xbf16>, vector<16x128xbf16>, vector<80x128xf32> -> vector<80x128xf32>
    %36 = arith.addf %30, %35 : vector<80x128xf32>
    %c0_33 = arith.constant 0 : index
    %c20 = arith.constant 20 : index
    %c0_34 = arith.constant 0 : index
    %37 = vector.load %arg2[%c0_33, %c20, %c0_34] : memref<1x104x16xbf16, #tpu.memory_space<vmem>>, vector<1x80x16xbf16>
    %38 = vector.shape_cast %37 : vector<1x80x16xbf16> to vector<80x16xbf16>
    %c6 = arith.constant 6 : index
    %c0_35 = arith.constant 0 : index
    %c0_36 = arith.constant 0 : index
    %39 = vector.load %arg3[%c6, %c0_35, %c0_36] : memref<9x16x128xbf16, #tpu.memory_space<vmem>>, vector<1x16x128xbf16>
    %40 = vector.shape_cast %39 : vector<1x16x128xbf16> to vector<16x128xbf16>
    %cst_37 = arith.constant dense<0.000000e+00> : vector<80x128xf32>
    %41 = tpu.matmul %38, %40, %cst_37 {dimension_numbers = #tpu.dot_dimension_numbers<[1], [0], [0], [1], [0, 0, 1, 1], [], []>} : vector<80x16xbf16>, vector<16x128xbf16>, vector<80x128xf32> -> vector<80x128xf32>
    %42 = arith.addf %36, %41 : vector<80x128xf32>
    %c0_38 = arith.constant 0 : index
    %c21 = arith.constant 21 : index
    %c0_39 = arith.constant 0 : index
    %43 = vector.load %arg2[%c0_38, %c21, %c0_39] : memref<1x104x16xbf16, #tpu.memory_space<vmem>>, vector<1x80x16xbf16>
    %44 = vector.shape_cast %43 : vector<1x80x16xbf16> to vector<80x16xbf16>
    %c7 = arith.constant 7 : index
    %c0_40 = arith.constant 0 : index
    %c0_41 = arith.constant 0 : index
    %45 = vector.load %arg3[%c7, %c0_40, %c0_41] : memref<9x16x128xbf16, #tpu.memory_space<vmem>>, vector<1x16x128xbf16>
    %46 = vector.shape_cast %45 : vector<1x16x128xbf16> to vector<16x128xbf16>
    %cst_42 = arith.constant dense<0.000000e+00> : vector<80x128xf32>
    %47 = tpu.matmul %44, %46, %cst_42 {dimension_numbers = #tpu.dot_dimension_numbers<[1], [0], [0], [1], [0, 0, 1, 1], [], []>} : vector<80x16xbf16>, vector<16x128xbf16>, vector<80x128xf32> -> vector<80x128xf32>
    %48 = arith.addf %42, %47 : vector<80x128xf32>
    %c0_43 = arith.constant 0 : index
    %c22 = arith.constant 22 : index
    %c0_44 = arith.constant 0 : index
    %49 = vector.load %arg2[%c0_43, %c22, %c0_44] : memref<1x104x16xbf16, #tpu.memory_space<vmem>>, vector<1x80x16xbf16>
    %50 = vector.shape_cast %49 : vector<1x80x16xbf16> to vector<80x16xbf16>
    %c8 = arith.constant 8 : index
    %c0_45 = arith.constant 0 : index
    %c0_46 = arith.constant 0 : index
    %51 = vector.load %arg3[%c8, %c0_45, %c0_46] : memref<9x16x128xbf16, #tpu.memory_space<vmem>>, vector<1x16x128xbf16>
    %52 = vector.shape_cast %51 : vector<1x16x128xbf16> to vector<16x128xbf16>
    %cst_47 = arith.constant dense<0.000000e+00> : vector<80x128xf32>
    %53 = tpu.matmul %50, %52, %cst_47 {dimension_numbers = #tpu.dot_dimension_numbers<[1], [0], [0], [1], [0, 0, 1, 1], [], []>} : vector<80x16xbf16>, vector<16x128xbf16>, vector<80x128xf32> -> vector<80x128xf32>
    %54 = arith.addf %48, %53 : vector<80x128xf32>
    %c0_48 = arith.constant 0 : index
    %c0_49 = arith.constant 0 : index
    %55 = vector.load %arg4[%c0_48, %c0_49] : memref<1x128xf32, #tpu.memory_space<vmem>>, vector<1x128xf32>
    %56 = vector.broadcast %55 : vector<1x128xf32> to vector<80x128xf32>
    %57 = arith.addf %54, %56 : vector<80x128xf32>
    %cst_50 = arith.constant 0.000000e+00 : f32
    %58 = vector.broadcast %cst_50 : f32 to vector<80x128xf32>
    %59 = arith.cmpf ogt, %57, %58 : vector<80x128xf32>
    %cst_51 = arith.constant 2.000000e-01 : f32
    %60 = vector.broadcast %cst_51 : f32 to vector<80x128xf32>
    %61 = arith.mulf %60, %57 : vector<80x128xf32>
    %62 = arith.select %59, %57, %61 : vector<80x128xi1>, vector<80x128xf32>
    %c0_52 = arith.constant 0 : index
    %c0_53 = arith.constant 0 : index
    %c0_54 = arith.constant 0 : index
    %63 = vector.load %arg5[%c0_52, %c0_53, %c0_54] : memref<1x80x128xf32, #tpu.memory_space<vmem>>, vector<1x80x128xf32>
    %64 = vector.shape_cast %63 : vector<1x80x128xf32> to vector<80x128xf32>
    %65 = vector.shape_cast %62 : vector<80x128xf32> to vector<1x80x128xf32>
    tpu.vector_store %arg5[%c0_52, %c0_53, %c0_54], %65 {strides = array<i32>} : memref<1x80x128xf32, #tpu.memory_space<vmem>>, vector<1x80x128xf32>,
    return
  }
  func.func @transform_0(%arg0: i32, %arg1: i32) -> (i32, i32, i32) {
    %c0_i32 = arith.constant 0 : i32
    %c0_i32_0 = arith.constant 0 : i32
    %c0_i32_1 = arith.constant 0 : i32
    return %arg0, %c0_i32, %c0_i32_0 : i32, i32, i32
  }
  func.func @transform_1(%arg0: i32, %arg1: i32) -> (i32, i32, i32) {
    %c0_i32 = arith.constant 0 : i32
    %c0_i32_0 = arith.constant 0 : i32
    %c0_i32_1 = arith.constant 0 : i32
    return %c0_i32, %c0_i32_0, %arg1 : i32, i32, i32
  }
  func.func @transform_2(%arg0: i32, %arg1: i32) -> (i32, i32) {
    %c0_i32 = arith.constant 0 : i32
    %c0_i32_0 = arith.constant 0 : i32
    return %c0_i32, %arg1 : i32, i32
  }
  func.func @transform_3(%arg0: i32, %arg1: i32) -> (i32, i32, i32) {
    %c0_i32 = arith.constant 0 : i32
    %c0_i32_0 = arith.constant 0 : i32
    return %arg0, %c0_i32, %arg1 : i32, i32, i32
  }
}

</mosaic_0001>

<llo_original>
// kernel: tpu_custom_call.1
$region0: #{tpu_custom_call.1}
  #allocation0 [shape = 'u32[]', space=smem, size = 0x4, offset = 0x4, fixed_abs, tag = 'smem constant byte address 0x4 - core index']
  #allocation1 [shape = 'u32[144,128]{1,0:T(1,128)}', space=vmem, size = 0x12000, scoped, tag = 'internal scratch']
  %s0 = inlined_call_operand.vmem [shape: bf16[2,104,16], index: 0, kind: input, shape index: {}]
  %s1 = inlined_call_operand.vmem [shape: bf16[9,16,128], index: 1, kind: input, shape index: {}]
  %s2 = inlined_call_operand.vmem [shape: f32[1,128], index: 2, kind: input, shape index: {}]
  %s3 = inlined_call_operand.hbm [shape: f32[2,80,128], index: 3, kind: output, shape index: {}]
  %s4 = sld [smem:[#allocation0]]
  $region45: #{tpu_custom_call.1} parent=0
    _
  %s6 = ssub.s32 1, %s4
  %s7 = scalar_select 0, %s6, %s4
  $region1: #{tpu_custom_call.1} parent=0
    #allocation2 [shape = 'u8[81920]{0}', space=vmem, size = 0x14000, scoped, tag = 'output window, operand 0']
    #allocation3 [shape = 's32[2]{0}', space=sflag, size = 0x8, scoped, tag = 'scoped memory for tpu_custom_call.1']
    %8 = vsyncpa [#allocation3], 0
    %s9 = scalar_lea.sflag [#allocation3], 1
    %10 = vsyncpa %s9, 0
    loop: start=0, step=1, limit=4
    $region2: #{tpu_custom_call.1} parent=1 // loop_pre_header
      _
    $region3: #{tpu_custom_call.1} parent=1 // loop_header
      %s12 = sphi 0, %s16
      %p13 = scmp.ge.s32.totalorder %s12, 4
      %s19 = sphi 0, %s31
      %s20 = sphi 0, %s27
      %s21 = sphi 0, %s19
      %s22 = sphi 0, %s20
      %s23 = sphi 0, %s21
      %s24 = sphi 0, %s22
      %s34 = sphi 0, %s36
      %s37 = sphi 0, %s34
      %s38 = sphi 0, %s37
      %s54 = sphi 0, %s38
      %s60 = sphi 0, %s62
      %s63 = sphi 0, %s60
      %s64 = sphi 0, %s63
      %s80 = sphi 0, %s64
      %s86 = sphi 0, %s88
      %s89 = sphi 0, %s86
      %s90 = sphi 0, %s89
      %s106 = sphi 0, %s90
      %s114 = sphi 0, %s116
      %s117 = sphi 0, %s114
      %s118 = sphi 0, %s117
      %s134 = sphi 0, %s118
    $region4: #{tpu_custom_call.1} parent=1 // loop_header_branch
      %15 = sbr.rel (%p13) target = $region8
    $region5: #{tpu_custom_call.1} parent=1 // loop_body
      %s17 = ssub.s32 %s12, 1
      %s18 = ssub.s32 %s12, 2
      %s25 = sadd.s32 1, %s20
      %p26 = scmp.ge.s32.totalorder %s25, 1
      %s27 = scalar_select %p26, 0, %s25
      %s28 = sadd.s32 1, %s19
      %s29 = scalar_select %p26, %s28, %s19
      %p30 = scmp.ge.s32.totalorder %s29, 2
      %s31 = scalar_select %p30, 0, %s29
      %s32 = ssub.s32 %s19, %s31
      %p33 = scmp.eq.s32.totalorder %s32, 0
      %s35 = sadd.s32 %s34, 1
      %s36 = scalar_select %p33, %s34, %s35
      %p39 = pneg %p33
      %p40 = scmp.eq.s32.totalorder %s12, 1
      %p41 = por %p39, %p40
      %p42 = scmp.ne.s32.totalorder %s34, %s37
      %p43 = scmp.eq.s32.totalorder %s12, 0
      %p44 = por %p42, %p43
      %p45 = scmp.ne.s32.totalorder %s34, %s37
      %p46 = scmp.eq.s32.totalorder %s17, 1
      %p47 = por %p45, %p46
      %p48 = scmp.ne.s32.totalorder %s37, %s38
      %p49 = scmp.eq.s32.totalorder %s17, 0
      %p50 = por %p48, %p49
      %p51 = scmp.ne.s32.totalorder %s37, %s38
      %p52 = scmp.eq.s32.totalorder %s18, 1
      %p53 = por %p51, %p52
      %p55 = scmp.ne.s32.totalorder %s38, %s54
      %p56 = scmp.eq.s32.totalorder %s18, 0
      %p57 = por %p55, %p56
      %s58 = ssub.s32 %s20, %s27
      %p59 = scmp.eq.s32.totalorder %s58, 0
      %s61 = sadd.s32 %s60, 1
      %s62 = scalar_select %p59, %s60, %s61
      %p65 = pneg %p59
      %p66 = scmp.eq.s32.totalorder %s12, 1
      %p67 = por %p65, %p66
      %p68 = scmp.ne.s32.totalorder %s60, %s63
      %p69 = scmp.eq.s32.totalorder %s12, 0
      %p70 = por %p68, %p69
      %p71 = scmp.ne.s32.totalorder %s60, %s63
      %p72 = scmp.eq.s32.totalorder %s17, 1
      %p73 = por %p71, %p72
      %p74 = scmp.ne.s32.totalorder %s63, %s64
      %p75 = scmp.eq.s32.totalorder %s17, 0
      %p76 = por %p74, %p75
      %p77 = scmp.ne.s32.totalorder %s63, %s64
      %p78 = scmp.eq.s32.totalorder %s18, 1
      %p79 = por %p77, %p78
      %p81 = scmp.ne.s32.totalorder %s64, %s80
      %p82 = scmp.eq.s32.totalorder %s18, 0
      %p83 = por %p81, %p82
      %s84 = ssub.s32 %s20, %s27
      %p85 = scmp.eq.s32.totalorder %s84, 0
      %s87 = sadd.s32 %s86, 1
      %s88 = scalar_select %p85, %s86, %s87
      %p91 = pneg %p85
      %p92 = scmp.eq.s32.totalorder %s12, 1
      %p93 = por %p91, %p92
      %p94 = scmp.ne.s32.totalorder %s86, %s89
      %p95 = scmp.eq.s32.totalorder %s12, 0
      %p96 = por %p94, %p95
      %p97 = scmp.ne.s32.totalorder %s86, %s89
      %p98 = scmp.eq.s32.totalorder %s17, 1
      %p99 = por %p97, %p98
      %p100 = scmp.ne.s32.totalorder %s89, %s90
      %p101 = scmp.eq.s32.totalorder %s17, 0
      %p102 = por %p100, %p101
      %p103 = scmp.ne.s32.totalorder %s89, %s90
      %p104 = scmp.eq.s32.totalorder %s18, 1
      %p105 = por %p103, %p104
      %p107 = scmp.ne.s32.totalorder %s90, %s106
      %p108 = scmp.eq.s32.totalorder %s18, 0
      %p109 = por %p107, %p108
      %s110 = ssub.s32 %s19, %s31
      %s111 = ssub.s32 %s20, %s27
      %s112 = sor.u32 %s110, %s111
      %p113 = scmp.eq.s32.totalorder %s112, 0
      %s115 = sadd.s32 %s114, 1
      %s116 = scalar_select %p113, %s114, %s115
      %p119 = pneg %p113
      %p120 = scmp.eq.s32.totalorder %s12, 1
      %p121 = por %p119, %p120
      %p122 = scmp.ne.s32.totalorder %s114, %s117
      %p123 = scmp.eq.s32.totalorder %s12, 0
      %p124 = por %p122, %p123
      %p125 = scmp.ne.s32.totalorder %s114, %s117
      %p126 = scmp.eq.s32.totalorder %s17, 1
      %p127 = por %p125, %p126
      %p128 = scmp.ne.s32.totalorder %s117, %s118
      %p129 = scmp.eq.s32.totalorder %s17, 0
      %p130 = por %p128, %p129
      %p131 = scmp.ne.s32.totalorder %s117, %s118
      %p132 = scmp.eq.s32.totalorder %s18, 1
      %p133 = por %p131, %p132
      %p135 = scmp.ne.s32.totalorder %s118, %s134
      %p136 = scmp.eq.s32.totalorder %s18, 0
      %p137 = por %p135, %p136
      %p138 = scmp.le.s32.totalorder 1, %s12
      %p139 = scmp.lt.s32.totalorder %s12, 3
      %p140 = pnand %p138, %p139
      %p141 = pneg %p140
      // Predicated region
      $region9: #{tpu_custom_call.1} parent=5 // pred_check
        _
      $region10: #{tpu_custom_call.1} parent=5 // pred_check_branch
        %143 = sbr.rel (%p140) target = $region12
      $region11: #{tpu_custom_call.1} parent=5 // pred_region
        %s144 = ssub.s32 %s12, 1
        // Predicated region
        $region13: #{tpu_custom_call.1} parent=11 // pred_check
          %p145 = pneg %p76
        $region14: #{tpu_custom_call.1} parent=11 // pred_check_branch
          %147 = sbr.rel (%p145) target = $region16
        $region15: #{tpu_custom_call.1} parent=11 // pred_region
          %p148 = scmp.lt.s32.totalorder %s22, 0
          %s149 = scalar_select %p148, %s22, 0
          %s150 = smul.addr %s149, 4
          %s151 = scalar_lea.vmem %s1, %s150
        $region16: #{tpu_custom_call.1} parent=11 // pred_fallthru
          _
        // Predicated region
        $region17: #{tpu_custom_call.1} parent=11 // pred_check
          %p152 = pneg %p102
        $region18: #{tpu_custom_call.1} parent=11 // pred_check_branch
          %154 = sbr.rel (%p152) target = $region20
        $region19: #{tpu_custom_call.1} parent=11 // pred_region
          %p155 = scmp.lt.s32.totalorder %s22, 0
          %s156 = scalar_select %p155, %s22, 0
          %s157 = scalar_lea.vmem %s2, %s156
        $region20: #{tpu_custom_call.1} parent=11 // pred_fallthru
          _
      $region12: #{tpu_custom_call.1} parent=5 // pred_fallthru
        _
      %p158 = scmp.lt.s32.totalorder %s12, 2
      // Predicated region
      $region21: #{tpu_custom_call.1} parent=5 // pred_check
        %p159 = pneg %p158
      $region22: #{tpu_custom_call.1} parent=5 // pred_check_branch
        %161 = sbr.rel (%p159) target = $region24
      $region23: #{tpu_custom_call.1} parent=5 // pred_region
        // Predicated region
        $region25: #{tpu_custom_call.1} parent=23 // pred_check
          %p162 = pneg %p44
        $region26: #{tpu_custom_call.1} parent=23 // pred_check_branch
          %164 = sbr.rel (%p162) target = $region28
        $region27: #{tpu_custom_call.1} parent=23 // pred_region
          %p165 = scmp.lt.s32.totalorder %s19, 1
          %s166 = scalar_select %p165, %s19, 1
          %s167 = smul.addr %s166, 13
          %s168 = smul.addr %s167, 4
          %s169 = scalar_lea.vmem %s0, %s168
        $region28: #{tpu_custom_call.1} parent=23 // pred_fallthru
          _
      $region24: #{tpu_custom_call.1} parent=5 // pred_fallthru
        _
      %p170 = scmp.le.s32.totalorder 1, %s12
      %p171 = scmp.lt.s32.totalorder %s12, 3
      %p172 = pnand %p170, %p171
      %p173 = pneg %p172
      // Predicated region
      $region29: #{tpu_custom_call.1} parent=5 // pred_check
        _
      $region30: #{tpu_custom_call.1} parent=5 // pred_check_branch
        %175 = sbr.rel (%p172) target = $region32
      $region31: #{tpu_custom_call.1} parent=5 // pred_region
        %s176 = ssub.s32 %s12, 1
        %p177 = scmp.lt.s32.totalorder %s21, 1
        %s178 = scalar_select %p177, %s21, 1
        %s179 = smul.addr %s178, 13
        %s180 = smul.addr %s179, 4
        %s181 = scalar_lea.vmem %s0, %s180
        %p182 = pneg %p50
        %p183 = pneg %p47
        %p184 = scmp.lt.s32.totalorder %s22, 0
        %s185 = scalar_select %p184, %s22, 0
        %s186 = smul.addr %s185, 4
        %s187 = scalar_lea.vmem %s1, %s186
        %p188 = pneg %p76
        %p189 = pneg %p73
        %p190 = scmp.lt.s32.totalorder %s22, 0
        %s191 = scalar_select %p190, %s22, 0
        %s192 = scalar_lea.vmem %s2, %s191
        %p193 = pneg %p102
        %p194 = pneg %p99
        %p195 = pneg %p130
        %p196 = pneg %p127
        %s197 = sand.u32 %s117, 1
        %s198 = scalar_lea.sflag [#allocation3], %s197
        %s199 = sand.u32 %s117, 1
        %s200 = smul.addr %s199, 80
        %s201 = scalar_lea.vmem [#allocation2], %s200
        %p202 = scmp.lt.s32.totalorder %s21, 1
        %s203 = scalar_select %p202, %s21, 1
        %s204 = smul.addr %s203, 13
        %s205 = smul.addr %s204, 4
        %s206 = scalar_lea.vmem %s0, %s205
        %p207 = scmp.lt.s32.totalorder %s22, 0
        %s208 = scalar_select %p207, %s22, 0
        %s209 = smul.addr %s208, 4
        %s210 = scalar_lea.vmem %s1, %s209
        %p211 = scmp.lt.s32.totalorder %s22, 0
        %s212 = scalar_select %p211, %s22, 0
        %s213 = scalar_lea.vmem %s2, %s212
        %v215 = vld [vmem:[%s206] sm:$0xf]
        %v216 = vld [vmem:[%s206 + $0x4] sm:$0xf]
        %v217 = vld [vmem:[%s206 + $0x8] sm:$0xf]
        %v218 = vld [vmem:[%s206 + $0xc] sm:$0xf]
        %v219 = vld [vmem:[%s206 + $0x10] sm:$0xf]
        %v220 = vld [vmem:[%s206 + $0x14] sm:$0xf]
        %v221 = vld [vmem:[%s206 + $0x18] sm:$0xf]
        %v222 = vld [vmem:[%s206 + $0x1c] sm:$0xf]
        %v223 = vld [vmem:[%s206 + $0x20] sm:$0xf]
        %v224 = vld [vmem:[%s206 + $0x24] sm:$0xf]
        %v225 = vld [vmem:[%s210] sm:$0xf]
        %v226 = vld [vmem:[%s210 + $0x4] sm:$0xf]
        %v227 = vld [vmem:[%s206 + $0x28] sm:$0x1]
        %s228 = scalar_lea.vmem %s210, 8
        %v229 = vld [vmem:[%s228] sm:$0xf]
        %v230 = vld [vmem:[%s228 + $0x4] sm:$0xf]
        %v242 = vunpack.c.l.b16 %v215
        %v243 = vunpack.c.l.b16 %v216
        %v244 = vunpack.c.l.b16 %v217
        %v245 = vunpack.c.l.b16 %v218
        %v246 = vunpack.c.l.b16 %v219
        %v247 = vunpack.c.l.b16 %v220
        %v248 = vunpack.c.l.b16 %v221
        %v249 = vunpack.c.l.b16 %v222
        %v250 = vunpack.c.l.b16 %v223
        %v251 = vunpack.c.l.b16 %v224
        %v252 = vunpack.c.l.b16 %v227
        %v253 = vpack.c.b16 %v243, %v242
        %v254 = vpack.c.b16 %v245, %v244
        %v255 = vpack.c.b16 %v247, %v246
        %v256 = vpack.c.b16 %v249, %v248
        %v257 = vpack.c.b16 %v251, %v250
        %v258 = vpack.c.b16 %v252, %v252
        %vm259 = vsmask.f32 7424
        %v261 = vshrl.u32 %v253, 16
        %v263 = vshll.u32 %v253, 16
        %v265 = vrot.slane %v263, 1
        %v266 = vor.u32 %v261, %v265
        %v268 = vshll.u32 %v254, 16
        %v270 = vrot.slane %v268, 1
        %v271 = vsel %vm259, %v266, %v270
        %v272 = vshrl.u32 %v254, 16
        %v274 = vor.u32 %v272, %v270
        %v276 = vshll.u32 %v255, 16
        %v278 = vrot.slane %v276, 1
        %v279 = vsel %vm259, %v274, %v278
        %v280 = vshrl.u32 %v255, 16
        %v282 = vor.u32 %v280, %v278
        %v284 = vshll.u32 %v256, 16
        %v286 = vrot.slane %v284, 1
        %v287 = vsel %vm259, %v282, %v286
        %v288 = vshrl.u32 %v256, 16
        %v290 = vor.u32 %v288, %v286
        %v292 = vshll.u32 %v257, 16
        %v294 = vrot.slane %v292, 1
        %v295 = vsel %vm259, %v290, %v294
        %v296 = vshrl.u32 %v257, 16
        %v298 = vor.u32 %v296, %v294
        %v300 = vshll.u32 %v258, 16
        %v302 = vrot.slane %v300, 1
        %v303 = vsel %vm259, %v298, %v302
        %v306 = vunpack.c.l.b16 %v229
        %v307 = vunpack.c.l.b16 %v230
        %v308 = vpack.c.b16 %v307, %v306
        %vm310 = vcmask 130048
        %v312 = vsel %vm310, %v271, 0
        %v315 = vsel %vm310, %v279, 0
        %v318 = vsel %vm310, %v287, 0
        %v321 = vsel %vm310, %v295, 0
        %v324 = vsel %vm310, %v303, 0
        %326 = vmatprep.subr.bf16.mxu0 0
        %327 = vmatpush1.bf16.msra.mxu0 %v308
        %328 = vmatprep.subr.bf16.mxu0 0
        %329 = vmatpush1.bf16.msra.mxu0 0
        %330 = vmatprep.subr.bf16.mxu0 0
        %331 = vmatpush1.bf16.msra.mxu0 0
        %332 = vmatprep.subr.bf16.mxu0 0
        %333 = vmatpush1.bf16.msra.mxu0 0
        %334 = vmatprep.subr.bf16.mxu0 0
        %335 = vmatpush1.bf16.msra.mxu0 0
        %336 = vmatprep.subr.bf16.mxu0 0
        %337 = vmatpush1.bf16.msra.mxu0 0
        %338 = vmatprep.subr.bf16.mxu0 0
        %339 = vmatpush1.bf16.msra.mxu0 0
        %340 = vmatprep.subr.bf16.mxu0 0
        %341 = vmatpush1.bf16.msra.mxu0 0
        %342 = vmatprep.subr.bf16.mxu0 0
        %343 = vmatpush1.bf16.msra.mxu0 0
        %344 = vmatprep.subr.bf16.mxu0 0
        %345 = vmatpush1.bf16.msra.mxu0 0
        %346 = vmatprep.subr.bf16.mxu0 0
        %347 = vmatpush1.bf16.msra.mxu0 0
        %348 = vmatprep.subr.bf16.mxu0 0
        %349 = vmatpush1.bf16.msra.mxu0 0
        %350 = vmatprep.subr.bf16.mxu0 0
        %351 = vmatpush1.bf16.msra.mxu0 0
        %352 = vmatprep.subr.bf16.mxu0 0
        %353 = vmatpush1.bf16.msra.mxu0 0
        %354 = vmatprep.subr.bf16.mxu0 0
        %355 = vmatpush1.bf16.msra.mxu0 0
        %356 = vmatprep.subr.bf16.mxu0 0
        %357 = vmatpush1.bf16.msra.mxu0 0
        %358 = vmatprep.mubr.bf16.mxu0 0
        %359 = vmatmul.mubr.bf16.gmra.mrb[0].mxu0 %v312
        %v360 = vpop.f32.mrb[0].mxu0
        %v361 = vadd.f32 0.0, %v360
        %v362 = vpop.f32.mrb[0].mxu0
        %v363 = vpop.f32.mrb[0].mxu0
        %v364 = vadd.f32 0.0, %v363
        %v365 = vpop.f32.mrb[0].mxu0
        %366 = vmatprep.mubr.bf16.mxu0 0
        %367 = vmatmul.mubr.bf16.gmra.mrb[0].mxu0 %v315
        %v368 = vpop.f32.mrb[0].mxu0
        %v369 = vadd.f32 0.0, %v368
        %v370 = vpop.f32.mrb[0].mxu0
        %v371 = vpop.f32.mrb[0].mxu0
        %v372 = vadd.f32 0.0, %v371
        %v373 = vpop.f32.mrb[0].mxu0
        %374 = vmatprep.mubr.bf16.mxu0 0
        %375 = vmatmul.mubr.bf16.gmra.mrb[0].mxu0 %v318
        %v376 = vpop.f32.mrb[0].mxu0
        %v377 = vadd.f32 0.0, %v376
        %v378 = vpop.f32.mrb[0].mxu0
        %v379 = vpop.f32.mrb[0].mxu0
        %v380 = vadd.f32 0.0, %v379
        %v381 = vpop.f32.mrb[0].mxu0
        %382 = vmatprep.mubr.bf16.mxu0 0
        %383 = vmatmul.mubr.bf16.gmra.mrb[0].mxu0 %v321
        %v384 = vpop.f32.mrb[0].mxu0
        %v385 = vadd.f32 0.0, %v384
        %v386 = vpop.f32.mrb[0].mxu0
        %v387 = vpop.f32.mrb[0].mxu0
        %v388 = vadd.f32 0.0, %v387
        %v389 = vpop.f32.mrb[0].mxu0
        %390 = vmatprep.mubr.bf16.mxu0 0
        %391 = vmatmul.mubr.bf16.gmra.mrb[0].mxu0 %v324
        %v392 = vpop.f32.mrb[0].mxu0
        %v393 = vadd.f32 0.0, %v392
        %v394 = vpop.f32.mrb[0].mxu0
        %v395 = vpop.f32.mrb[0].mxu0
        %v396 = vadd.f32 0.0, %v395
        %v397 = vpop.f32.mrb[0].mxu0
        %398 = vdwg.mxu0
        %v401 = vunpack.c.l.b16 %v225
        %v402 = vunpack.c.l.b16 %v226
        %v403 = vpack.c.b16 %v402, %v401
        %v405 = vsel %vm310, %v253, 0
        %v407 = vsel %vm310, %v254, 0
        %v409 = vsel %vm310, %v255, 0
        %v411 = vsel %vm310, %v256, 0
        %v413 = vsel %vm310, %v257, 0
        %415 = vmatprep.subr.bf16.mxu0 0
        %416 = vmatpush1.bf16.msra.mxu0 %v403
        %417 = vmatprep.subr.bf16.mxu0 0
        %418 = vmatpush1.bf16.msra.mxu0 0
        %419 = vmatprep.subr.bf16.mxu0 0
        %420 = vmatpush1.bf16.msra.mxu0 0
        %421 = vmatprep.subr.bf16.mxu0 0
        %422 = vmatpush1.bf16.msra.mxu0 0
        %423 = vmatprep.subr.bf16.mxu0 0
        %424 = vmatpush1.bf16.msra.mxu0 0
        %425 = vmatprep.subr.bf16.mxu0 0
        %426 = vmatpush1.bf16.msra.mxu0 0
        %427 = vmatprep.subr.bf16.mxu0 0
        %428 = vmatpush1.bf16.msra.mxu0 0
        %429 = vmatprep.subr.bf16.mxu0 0
        %430 = vmatpush1.bf16.msra.mxu0 0
        %431 = vmatprep.subr.bf16.mxu0 0
        %432 = vmatpush1.bf16.msra.mxu0 0
        %433 = vmatprep.subr.bf16.mxu0 0
        %434 = vmatpush1.bf16.msra.mxu0 0
        %435 = vmatprep.subr.bf16.mxu0 0
        %436 = vmatpush1.bf16.msra.mxu0 0
        %437 = vmatprep.subr.bf16.mxu0 0
        %438 = vmatpush1.bf16.msra.mxu0 0
        %439 = vmatprep.subr.bf16.mxu0 0
        %440 = vmatpush1.bf16.msra.mxu0 0
        %441 = vmatprep.subr.bf16.mxu0 0
        %442 = vmatpush1.bf16.msra.mxu0 0
        %443 = vmatprep.subr.bf16.mxu0 0
        %444 = vmatpush1.bf16.msra.mxu0 0
        %445 = vmatprep.subr.bf16.mxu0 0
        %446 = vmatpush1.bf16.msra.mxu0 0
        %447 = vmatprep.mubr.bf16.mxu0 0
        %448 = vmatmul.mubr.bf16.gmra.mrb[0].mxu0 %v405
        %v449 = vpop.f32.mrb[0].mxu0
        %v450 = vadd.f32 %v361, %v449
        %v451 = vpop.f32.mrb[0].mxu0
        %v452 = vpop.f32.mrb[0].mxu0
        %v453 = vadd.f32 %v364, %v452
        %v454 = vpop.f32.mrb[0].mxu0
        %455 = vmatprep.mubr.bf16.mxu0 0
        %456 = vmatmul.mubr.bf16.gmra.mrb[0].mxu0 %v407
        %v457 = vpop.f32.mrb[0].mxu0
        %v458 = vadd.f32 %v369, %v457
        %v459 = vpop.f32.mrb[0].mxu0
        %v460 = vpop.f32.mrb[0].mxu0
        %v461 = vadd.f32 %v372, %v460
        %v462 = vpop.f32.mrb[0].mxu0
        %463 = vmatprep.mubr.bf16.mxu0 0
        %464 = vmatmul.mubr.bf16.gmra.mrb[0].mxu0 %v409
        %v465 = vpop.f32.mrb[0].mxu0
        %v466 = vadd.f32 %v377, %v465
        %v467 = vpop.f32.mrb[0].mxu0
        %v468 = vpop.f32.mrb[0].mxu0
        %v469 = vadd.f32 %v380, %v468
        %v470 = vpop.f32.mrb[0].mxu0
        %471 = vmatprep.mubr.bf16.mxu0 0
        %472 = vmatmul.mubr.bf16.gmra.mrb[0].mxu0 %v411
        %v473 = vpop.f32.mrb[0].mxu0
        %v474 = vadd.f32 %v385, %v473
        %v475 = vpop.f32.mrb[0].mxu0
        %v476 = vpop.f32.mrb[0].mxu0
        %v477 = vadd.f32 %v388, %v476
        %v478 = vpop.f32.mrb[0].mxu0
        %479 = vmatprep.mubr.bf16.mxu0 0
        %480 = vmatmul.mubr.bf16.gmra.mrb[0].mxu0 %v413
        %v481 = vpop.f32.mrb[0].mxu0
        %v482 = vadd.f32 %v393, %v481
        %v483 = vpop.f32.mrb[0].mxu0
        %v484 = vpop.f32.mrb[0].mxu0
        %v485 = vadd.f32 %v396, %v484
        %v486 = vpop.f32.mrb[0].mxu0
        %487 = vdwg.mxu0
        %v488 = vld [vmem:[%s206] sm:$0xe]
        %s489 = scalar_lea.vmem %s210, 16
        %v490 = vld [vmem:[%s489] sm:$0xf]
        %v491 = vld [vmem:[%s489 + $0x4] sm:$0xf]
        %v493 = vunpack.c.l.b16 %v488
        %v494 = vpack.c.b16 %v243, %v493
        %vm495 = vcmask 1046528
        %v496 = vrot.slane %v494, 1
        %v497 = vrot.slane %v254, 1
        %v498 = vsel %vm495, %v496, %v497
        %v499 = vrot.slane %v255, 1
        %v500 = vsel %vm495, %v497, %v499
        %v501 = vrot.slane %v256, 1
        %v502 = vsel %vm495, %v499, %v501
        %v503 = vrot.slane %v257, 1
        %v504 = vsel %vm495, %v501, %v503
        %v505 = vrot.slane %v258, 1
        %v506 = vsel %vm495, %v503, %v505
        %v509 = vunpack.c.l.b16 %v490
        %v510 = vunpack.c.l.b16 %v491
        %v511 = vpack.c.b16 %v510, %v509
        %v514 = vsel %vm310, %v498, 0
        %v517 = vsel %vm310, %v500, 0
        %v520 = vsel %vm310, %v502, 0
        %v523 = vsel %vm310, %v504, 0
        %v526 = vsel %vm310, %v506, 0
        %528 = vmatprep.subr.bf16.mxu0 0
        %529 = vmatpush1.bf16.msra.mxu0 %v511
        %530 = vmatprep.subr.bf16.mxu0 0
        %531 = vmatpush1.bf16.msra.mxu0 0
        %532 = vmatprep.subr.bf16.mxu0 0
        %533 = vmatpush1.bf16.msra.mxu0 0
        %534 = vmatprep.subr.bf16.mxu0 0
        %535 = vmatpush1.bf16.msra.mxu0 0
        %536 = vmatprep.subr.bf16.mxu0 0
        %537 = vmatpush1.bf16.msra.mxu0 0
        %538 = vmatprep.subr.bf16.mxu0 0
        %539 = vmatpush1.bf16.msra.mxu0 0
        %540 = vmatprep.subr.bf16.mxu0 0
        %541 = vmatpush1.bf16.msra.mxu0 0
        %542 = vmatprep.subr.bf16.mxu0 0
        %543 = vmatpush1.bf16.msra.mxu0 0
        %544 = vmatprep.subr.bf16.mxu0 0
        %545 = vmatpush1.bf16.msra.mxu0 0
        %546 = vmatprep.subr.bf16.mxu0 0
        %547 = vmatpush1.bf16.msra.mxu0 0
        %548 = vmatprep.subr.bf16.mxu0 0
        %549 = vmatpush1.bf16.msra.mxu0 0
        %550 = vmatprep.subr.bf16.mxu0 0
        %551 = vmatpush1.bf16.msra.mxu0 0
        %552 = vmatprep.subr.bf16.mxu0 0
        %553 = vmatpush1.bf16.msra.mxu0 0
        %554 = vmatprep.subr.bf16.mxu0 0
        %555 = vmatpush1.bf16.msra.mxu0 0
        %556 = vmatprep.subr.bf16.mxu0 0
        %557 = vmatpush1.bf16.msra.mxu0 0
        %558 = vmatprep.subr.bf16.mxu0 0
        %559 = vmatpush1.bf16.msra.mxu0 0
        %560 = vmatprep.mubr.bf16.mxu0 0
        %561 = vmatmul.mubr.bf16.gmra.mrb[0].mxu0 %v514
        %v562 = vpop.f32.mrb[0].mxu0
        %v563 = vadd.f32 0.0, %v562
        %v564 = vpop.f32.mrb[0].mxu0
        %v565 = vpop.f32.mrb[0].mxu0
        %v566 = vadd.f32 0.0, %v565
        %v567 = vpop.f32.mrb[0].mxu0
        %568 = vmatprep.mubr.bf16.mxu0 0
        %569 = vmatmul.mubr.bf16.gmra.mrb[0].mxu0 %v517
        %v570 = vpop.f32.mrb[0].mxu0
        %v571 = vadd.f32 0.0, %v570
        %v572 = vpop.f32.mrb[0].mxu0
        %v573 = vpop.f32.mrb[0].mxu0
        %v574 = vadd.f32 0.0, %v573
        %v575 = vpop.f32.mrb[0].mxu0
        %576 = vmatprep.mubr.bf16.mxu0 0
        %577 = vmatmul.mubr.bf16.gmra.mrb[0].mxu0 %v520
        %v578 = vpop.f32.mrb[0].mxu0
        %v579 = vadd.f32 0.0, %v578
        %v580 = vpop.f32.mrb[0].mxu0
        %v581 = vpop.f32.mrb[0].mxu0
        %v582 = vadd.f32 0.0, %v581
        %v583 = vpop.f32.mrb[0].mxu0
        %584 = vmatprep.mubr.bf16.mxu0 0
        %585 = vmatmul.mubr.bf16.gmra.mrb[0].mxu0 %v523
        %v586 = vpop.f32.mrb[0].mxu0
        %v587 = vadd.f32 0.0, %v586
        %v588 = vpop.f32.mrb[0].mxu0
        %v589 = vpop.f32.mrb[0].mxu0
        %v590 = vadd.f32 0.0, %v589
        %v591 = vpop.f32.mrb[0].mxu0
        %592 = vmatprep.mubr.bf16.mxu0 0
        %593 = vmatmul.mubr.bf16.gmra.mrb[0].mxu0 %v526
        %v594 = vpop.f32.mrb[0].mxu0
        %v595 = vadd.f32 0.0, %v594
        %v596 = vpop.f32.mrb[0].mxu0
        %v597 = vpop.f32.mrb[0].mxu0
        %v598 = vadd.f32 0.0, %v597
        %v599 = vpop.f32.mrb[0].mxu0
        %600 = vdwg.mxu0
        %v601 = vadd.f32 %v450, %v563
        %v602 = vadd.f32 %v453, %v566
        %v603 = vadd.f32 %v458, %v571
        %v604 = vadd.f32 %v461, %v574
        %v605 = vadd.f32 %v466, %v579
        %v606 = vadd.f32 %v469, %v582
        %v607 = vadd.f32 %v474, %v587
        %v608 = vadd.f32 %v477, %v590
        %v609 = vadd.f32 %v482, %v595
        %v610 = vadd.f32 %v485, %v598
        %v611 = vld [vmem:[%s206 + $0x4] sm:$0xe]
        %v612 = vld [vmem:[%s206 + $0x8] sm:$0xf]
        %v613 = vld [vmem:[%s206 + $0xc] sm:$0xf]
        %v614 = vld [vmem:[%s206 + $0x10] sm:$0xf]
        %v615 = vld [vmem:[%s206 + $0x14] sm:$0xf]
        %v616 = vld [vmem:[%s206 + $0x18] sm:$0xf]
        %v617 = vld [vmem:[%s206 + $0x1c] sm:$0xf]
        %v618 = vld [vmem:[%s206 + $0x20] sm:$0xf]
        %v619 = vld [vmem:[%s206 + $0x24] sm:$0xf]
        %v620 = vld [vmem:[%s206 + $0x28] sm:$0xf]
        %v621 = vld [vmem:[%s206 + $0x2c] sm:$0x1]
        %s622 = scalar_lea.vmem %s210, 24
        %v623 = vld [vmem:[%s622] sm:$0xf]
        %v624 = vld [vmem:[%s622 + $0x4] sm:$0xf]
        %v636 = vunpack.c.l.b16 %v611
        %v637 = vunpack.c.l.b16 %v612
        %v638 = vunpack.c.l.b16 %v613
        %v639 = vunpack.c.l.b16 %v614
        %v640 = vunpack.c.l.b16 %v615
        %v641 = vunpack.c.l.b16 %v616
        %v642 = vunpack.c.l.b16 %v617
        %v643 = vunpack.c.l.b16 %v618
        %v644 = vunpack.c.l.b16 %v619
        %v645 = vunpack.c.l.b16 %v620
        %v646 = vunpack.c.l.b16 %v621
        %v647 = vpack.c.b16 %v637, %v636
        %v648 = vpack.c.b16 %v639, %v638
        %v649 = vpack.c.b16 %v641, %v640
        %v650 = vpack.c.b16 %v643, %v642
        %v651 = vpack.c.b16 %v645, %v644
        %v652 = vpack.c.b16 %v646, %v646
        %v653 = vrot.slane %v647, 1
        %v654 = vrot.slane %v648, 1
        %v655 = vsel %vm495, %v653, %v654
        %v656 = vrot.slane %v649, 1
        %v657 = vsel %vm495, %v654, %v656
        %v658 = vrot.slane %v650, 1
        %v659 = vsel %vm495, %v656, %v658
        %v660 = vrot.slane %v651, 1
        %v661 = vsel %vm495, %v658, %v660
        %v662 = vrot.slane %v652, 1
        %v663 = vsel %vm495, %v660, %v662
        %v666 = vunpack.c.l.b16 %v623
        %v667 = vunpack.c.l.b16 %v624
        %v668 = vpack.c.b16 %v667, %v666
        %v671 = vsel %vm310, %v655, 0
        %v674 = vsel %vm310, %v657, 0
        %v677 = vsel %vm310, %v659, 0
        %v680 = vsel %vm310, %v661, 0
        %v683 = vsel %vm310, %v663, 0
        %685 = vmatprep.subr.bf16.mxu0 0
        %686 = vmatpush1.bf16.msra.mxu0 %v668
        %687 = vmatprep.subr.bf16.mxu0 0
        %688 = vmatpush1.bf16.msra.mxu0 0
        %689 = vmatprep.subr.bf16.mxu0 0
        %690 = vmatpush1.bf16.msra.mxu0 0
        %691 = vmatprep.subr.bf16.mxu0 0
        %692 = vmatpush1.bf16.msra.mxu0 0
        %693 = vmatprep.subr.bf16.mxu0 0
        %694 = vmatpush1.bf16.msra.mxu0 0
        %695 = vmatprep.subr.bf16.mxu0 0
        %696 = vmatpush1.bf16.msra.mxu0 0
        %697 = vmatprep.subr.bf16.mxu0 0
        %698 = vmatpush1.bf16.msra.mxu0 0
        %699 = vmatprep.subr.bf16.mxu0 0
        %700 = vmatpush1.bf16.msra.mxu0 0
        %701 = vmatprep.subr.bf16.mxu0 0
        %702 = vmatpush1.bf16.msra.mxu0 0
        %703 = vmatprep.subr.bf16.mxu0 0
        %704 = vmatpush1.bf16.msra.mxu0 0
        %705 = vmatprep.subr.bf16.mxu0 0
        %706 = vmatpush1.bf16.msra.mxu0 0
        %707 = vmatprep.subr.bf16.mxu0 0
        %708 = vmatpush1.bf16.msra.mxu0 0
        %709 = vmatprep.subr.bf16.mxu0 0
        %710 = vmatpush1.bf16.msra.mxu0 0
        %711 = vmatprep.subr.bf16.mxu0 0
        %712 = vmatpush1.bf16.msra.mxu0 0
        %713 = vmatprep.subr.bf16.mxu0 0
        %714 = vmatpush1.bf16.msra.mxu0 0
        %715 = vmatprep.subr.bf16.mxu0 0
        %716 = vmatpush1.bf16.msra.mxu0 0
        %717 = vmatprep.mubr.bf16.mxu0 0
        %718 = vmatmul.mubr.bf16.gmra.mrb[0].mxu0 %v671
        %v719 = vpop.f32.mrb[0].mxu0
        %v720 = vadd.f32 0.0, %v719
        %v721 = vpop.f32.mrb[0].mxu0
        %v722 = vpop.f32.mrb[0].mxu0
        %v723 = vadd.f32 0.0, %v722
        %v724 = vpop.f32.mrb[0].mxu0
        %725 = vmatprep.mubr.bf16.mxu0 0
        %726 = vmatmul.mubr.bf16.gmra.mrb[0].mxu0 %v674
        %v727 = vpop.f32.mrb[0].mxu0
        %v728 = vadd.f32 0.0, %v727
        %v729 = vpop.f32.mrb[0].mxu0
        %v730 = vpop.f32.mrb[0].mxu0
        %v731 = vadd.f32 0.0, %v730
        %v732 = vpop.f32.mrb[0].mxu0
        %733 = vmatprep.mubr.bf16.mxu0 0
        %734 = vmatmul.mubr.bf16.gmra.mrb[0].mxu0 %v677
        %v735 = vpop.f32.mrb[0].mxu0
        %v736 = vadd.f32 0.0, %v735
        %v737 = vpop.f32.mrb[0].mxu0
        %v738 = vpop.f32.mrb[0].mxu0
        %v739 = vadd.f32 0.0, %v738
        %v740 = vpop.f32.mrb[0].mxu0
        %741 = vmatprep.mubr.bf16.mxu0 0
        %742 = vmatmul.mubr.bf16.gmra.mrb[0].mxu0 %v680
        %v743 = vpop.f32.mrb[0].mxu0
        %v744 = vadd.f32 0.0, %v743
        %v745 = vpop.f32.mrb[0].mxu0
        %v746 = vpop.f32.mrb[0].mxu0
        %v747 = vadd.f32 0.0, %v746
        %v748 = vpop.f32.mrb[0].mxu0
        %749 = vmatprep.mubr.bf16.mxu0 0
        %750 = vmatmul.mubr.bf16.gmra.mrb[0].mxu0 %v683
        %v751 = vpop.f32.mrb[0].mxu0
        %v752 = vadd.f32 0.0, %v751
        %v753 = vpop.f32.mrb[0].mxu0
        %v754 = vpop.f32.mrb[0].mxu0
        %v755 = vadd.f32 0.0, %v754
        %v756 = vpop.f32.mrb[0].mxu0
        %757 = vdwg.mxu0
        %v758 = vadd.f32 %v601, %v720
        %v759 = vadd.f32 %v602, %v723
        %v760 = vadd.f32 %v603, %v728
        %v761 = vadd.f32 %v604, %v731
        %v762 = vadd.f32 %v605, %v736
        %v763 = vadd.f32 %v606, %v739
        %v764 = vadd.f32 %v607, %v744
        %v765 = vadd.f32 %v608, %v747
        %v766 = vadd.f32 %v609, %v752
        %v767 = vadd.f32 %v610, %v755
        %v768 = vld [vmem:[%s206 + $0x2c] sm:$0x3]
        %s769 = scalar_lea.vmem %s210, 32
        %v770 = vld [vmem:[%s769] sm:$0xf]
        %v771 = vld [vmem:[%s769 + $0x4] sm:$0xf]
        %v773 = vunpack.c.l.b16 %v768
        %v774 = vpack.c.b16 %v773, %v773
        %vm775 = vsmask.f32 6400
        %v777 = vshrl.u32 %v647, 16
        %v779 = vrot.slane %v777, 1
        %v780 = vshll.u32 %v647, 16
        %v782 = vrot.slane %v780, 2
        %v783 = vor.u32 %v779, %v782
        %v785 = vshrl.u32 %v648, 16
        %v787 = vrot.slane %v785, 1
        %v788 = vshll.u32 %v648, 16
        %v790 = vrot.slane %v788, 2
        %v791 = vor.u32 %v787, %v790
        %v792 = vsel %vm775, %v783, %v791
        %v794 = vshrl.u32 %v649, 16
        %v796 = vrot.slane %v794, 1
        %v797 = vshll.u32 %v649, 16
        %v799 = vrot.slane %v797, 2
        %v800 = vor.u32 %v796, %v799
        %v801 = vsel %vm775, %v791, %v800
        %v803 = vshrl.u32 %v650, 16
        %v805 = vrot.slane %v803, 1
        %v806 = vshll.u32 %v650, 16
        %v808 = vrot.slane %v806, 2
        %v809 = vor.u32 %v805, %v808
        %v810 = vsel %vm775, %v800, %v809
        %v812 = vshrl.u32 %v651, 16
        %v814 = vrot.slane %v812, 1
        %v815 = vshll.u32 %v651, 16
        %v817 = vrot.slane %v815, 2
        %v818 = vor.u32 %v814, %v817
        %v819 = vsel %vm775, %v809, %v818
        %v821 = vshrl.u32 %v774, 16
        %v823 = vrot.slane %v821, 1
        %v824 = vshll.u32 %v774, 16
        %v826 = vrot.slane %v824, 2
        %v827 = vor.u32 %v823, %v826
        %v828 = vsel %vm775, %v818, %v827
        %v831 = vunpack.c.l.b16 %v770
        %v832 = vunpack.c.l.b16 %v771
        %v833 = vpack.c.b16 %v832, %v831
        %v836 = vsel %vm310, %v792, 0
        %v839 = vsel %vm310, %v801, 0
        %v842 = vsel %vm310, %v810, 0
        %v845 = vsel %vm310, %v819, 0
        %v848 = vsel %vm310, %v828, 0
        %850 = vmatprep.subr.bf16.mxu0 0
        %851 = vmatpush1.bf16.msra.mxu0 %v833
        %852 = vmatprep.subr.bf16.mxu0 0
        %853 = vmatpush1.bf16.msra.mxu0 0
        %854 = vmatprep.subr.bf16.mxu0 0
        %855 = vmatpush1.bf16.msra.mxu0 0
        %856 = vmatprep.subr.bf16.mxu0 0
        %857 = vmatpush1.bf16.msra.mxu0 0
        %858 = vmatprep.subr.bf16.mxu0 0
        %859 = vmatpush1.bf16.msra.mxu0 0
        %860 = vmatprep.subr.bf16.mxu0 0
        %861 = vmatpush1.bf16.msra.mxu0 0
        %862 = vmatprep.subr.bf16.mxu0 0
        %863 = vmatpush1.bf16.msra.mxu0 0
        %864 = vmatprep.subr.bf16.mxu0 0
        %865 = vmatpush1.bf16.msra.mxu0 0
        %866 = vmatprep.subr.bf16.mxu0 0
        %867 = vmatpush1.bf16.msra.mxu0 0
        %868 = vmatprep.subr.bf16.mxu0 0
        %869 = vmatpush1.bf16.msra.mxu0 0
        %870 = vmatprep.subr.bf16.mxu0 0
        %871 = vmatpush1.bf16.msra.mxu0 0
        %872 = vmatprep.subr.bf16.mxu0 0
        %873 = vmatpush1.bf16.msra.mxu0 0
        %874 = vmatprep.subr.bf16.mxu0 0
        %875 = vmatpush1.bf16.msra.mxu0 0
        %876 = vmatprep.subr.bf16.mxu0 0
        %877 = vmatpush1.bf16.msra.mxu0 0
        %878 = vmatprep.subr.bf16.mxu0 0
        %879 = vmatpush1.bf16.msra.mxu0 0
        %880 = vmatprep.subr.bf16.mxu0 0
        %881 = vmatpush1.bf16.msra.mxu0 0
        %882 = vmatprep.mubr.bf16.mxu0 0
        %883 = vmatmul.mubr.bf16.gmra.mrb[0].mxu0 %v836
        %v884 = vpop.f32.mrb[0].mxu0
        %v885 = vadd.f32 0.0, %v884
        %v886 = vpop.f32.mrb[0].mxu0
        %v887 = vpop.f32.mrb[0].mxu0
        %v888 = vadd.f32 0.0, %v887
        %v889 = vpop.f32.mrb[0].mxu0
        %890 = vmatprep.mubr.bf16.mxu0 0
        %891 = vmatmul.mubr.bf16.gmra.mrb[0].mxu0 %v839
        %v892 = vpop.f32.mrb[0].mxu0
        %v893 = vadd.f32 0.0, %v892
        %v894 = vpop.f32.mrb[0].mxu0
        %v895 = vpop.f32.mrb[0].mxu0
        %v896 = vadd.f32 0.0, %v895
        %v897 = vpop.f32.mrb[0].mxu0
        %898 = vmatprep.mubr.bf16.mxu0 0
        %899 = vmatmul.mubr.bf16.gmra.mrb[0].mxu0 %v842
        %v900 = vpop.f32.mrb[0].mxu0
        %v901 = vadd.f32 0.0, %v900
        %v902 = vpop.f32.mrb[0].mxu0
        %v903 = vpop.f32.mrb[0].mxu0
        %v904 = vadd.f32 0.0, %v903
        %v905 = vpop.f32.mrb[0].mxu0
        %906 = vmatprep.mubr.bf16.mxu0 0
        %907 = vmatmul.mubr.bf16.gmra.mrb[0].mxu0 %v845
        %v908 = vpop.f32.mrb[0].mxu0
        %v909 = vadd.f32 0.0, %v908
        %v910 = vpop.f32.mrb[0].mxu0
        %v911 = vpop.f32.mrb[0].mxu0
        %v912 = vadd.f32 0.0, %v911
        %v913 = vpop.f32.mrb[0].mxu0
        %914 = vmatprep.mubr.bf16.mxu0 0
        %915 = vmatmul.mubr.bf16.gmra.mrb[0].mxu0 %v848
        %v916 = vpop.f32.mrb[0].mxu0
        %v917 = vadd.f32 0.0, %v916
        %v918 = vpop.f32.mrb[0].mxu0
        %v919 = vpop.f32.mrb[0].mxu0
        %v920 = vadd.f32 0.0, %v919
        %v921 = vpop.f32.mrb[0].mxu0
        %922 = vdwg.mxu0
        %v923 = vadd.f32 %v758, %v885
        %v924 = vadd.f32 %v759, %v888
        %v925 = vadd.f32 %v760, %v893
        %v926 = vadd.f32 %v761, %v896
        %v927 = vadd.f32 %v762, %v901
        %v928 = vadd.f32 %v763, %v904
        %v929 = vadd.f32 %v764, %v909
        %v930 = vadd.f32 %v765, %v912
        %v931 = vadd.f32 %v766, %v917
        %v932 = vadd.f32 %v767, %v920
        %v933 = vld [vmem:[%s206 + $0x4] sm:$0xc]
        %s934 = scalar_lea.vmem %s210, 40
        %v935 = vld [vmem:[%s934] sm:$0xf]
        %v936 = vld [vmem:[%s934 + $0x4] sm:$0xf]
        %v938 = vunpack.c.l.b16 %v933
        %v939 = vpack.c.b16 %v637, %v938
        %vm940 = vcmask 1045504
        %v941 = vrot.slane %v939, 2
        %v942 = vrot.slane %v648, 2
        %v943 = vsel %vm940, %v941, %v942
        %v944 = vrot.slane %v649, 2
        %v945 = vsel %vm940, %v942, %v944
        %v946 = vrot.slane %v650, 2
        %v947 = vsel %vm940, %v944, %v946
        %v948 = vrot.slane %v651, 2
        %v949 = vsel %vm940, %v946, %v948
        %v950 = vrot.slane %v774, 2
        %v951 = vsel %vm940, %v948, %v950
        %v954 = vunpack.c.l.b16 %v935
        %v955 = vunpack.c.l.b16 %v936
        %v956 = vpack.c.b16 %v955, %v954
        %v959 = vsel %vm310, %v943, 0
        %v962 = vsel %vm310, %v945, 0
        %v965 = vsel %vm310, %v947, 0
        %v968 = vsel %vm310, %v949, 0
        %v971 = vsel %vm310, %v951, 0
        %973 = vmatprep.subr.bf16.mxu0 0
        %974 = vmatpush1.bf16.msra.mxu0 %v956
        %975 = vmatprep.subr.bf16.mxu0 0
        %976 = vmatpush1.bf16.msra.mxu0 0
        %977 = vmatprep.subr.bf16.mxu0 0
        %978 = vmatpush1.bf16.msra.mxu0 0
        %979 = vmatprep.subr.bf16.mxu0 0
        %980 = vmatpush1.bf16.msra.mxu0 0
        %981 = vmatprep.subr.bf16.mxu0 0
        %982 = vmatpush1.bf16.msra.mxu0 0
        %983 = vmatprep.subr.bf16.mxu0 0
        %984 = vmatpush1.bf16.msra.mxu0 0
        %985 = vmatprep.subr.bf16.mxu0 0
        %986 = vmatpush1.bf16.msra.mxu0 0
        %987 = vmatprep.subr.bf16.mxu0 0
        %988 = vmatpush1.bf16.msra.mxu0 0
        %989 = vmatprep.subr.bf16.mxu0 0
        %990 = vmatpush1.bf16.msra.mxu0 0
        %991 = vmatprep.subr.bf16.mxu0 0
        %992 = vmatpush1.bf16.msra.mxu0 0
        %993 = vmatprep.subr.bf16.mxu0 0
        %994 = vmatpush1.bf16.msra.mxu0 0
        %995 = vmatprep.subr.bf16.mxu0 0
        %996 = vmatpush1.bf16.msra.mxu0 0
        %997 = vmatprep.subr.bf16.mxu0 0
        %998 = vmatpush1.bf16.msra.mxu0 0
        %999 = vmatprep.subr.bf16.mxu0 0
        %1000 = vmatpush1.bf16.msra.mxu0 0
        %1001 = vmatprep.subr.bf16.mxu0 0
        %1002 = vmatpush1.bf16.msra.mxu0 0
        %1003 = vmatprep.subr.bf16.mxu0 0
        %1004 = vmatpush1.bf16.msra.mxu0 0
        %1005 = vmatprep.mubr.bf16.mxu0 0
        %1006 = vmatmul.mubr.bf16.gmra.mrb[0].mxu0 %v959
        %v1007 = vpop.f32.mrb[0].mxu0
        %v1008 = vadd.f32 0.0, %v1007
        %v1009 = vpop.f32.mrb[0].mxu0
        %v1010 = vpop.f32.mrb[0].mxu0
        %v1011 = vadd.f32 0.0, %v1010
        %v1012 = vpop.f32.mrb[0].mxu0
        %1013 = vmatprep.mubr.bf16.mxu0 0
        %1014 = vmatmul.mubr.bf16.gmra.mrb[0].mxu0 %v962
        %v1015 = vpop.f32.mrb[0].mxu0
        %v1016 = vadd.f32 0.0, %v1015
        %v1017 = vpop.f32.mrb[0].mxu0
        %v1018 = vpop.f32.mrb[0].mxu0
        %v1019 = vadd.f32 0.0, %v1018
        %v1020 = vpop.f32.mrb[0].mxu0
        %1021 = vmatprep.mubr.bf16.mxu0 0
        %1022 = vmatmul.mubr.bf16.gmra.mrb[0].mxu0 %v965
        %v1023 = vpop.f32.mrb[0].mxu0
        %v1024 = vadd.f32 0.0, %v1023
        %v1025 = vpop.f32.mrb[0].mxu0
        %v1026 = vpop.f32.mrb[0].mxu0
        %v1027 = vadd.f32 0.0, %v1026
        %v1028 = vpop.f32.mrb[0].mxu0
        %1029 = vmatprep.mubr.bf16.mxu0 0
        %1030 = vmatmul.mubr.bf16.gmra.mrb[0].mxu0 %v968
        %v1031 = vpop.f32.mrb[0].mxu0
        %v1032 = vadd.f32 0.0, %v1031
        %v1033 = vpop.f32.mrb[0].mxu0
        %v1034 = vpop.f32.mrb[0].mxu0
        %v1035 = vadd.f32 0.0, %v1034
        %v1036 = vpop.f32.mrb[0].mxu0
        %1037 = vmatprep.mubr.bf16.mxu0 0
        %1038 = vmatmul.mubr.bf16.gmra.mrb[0].mxu0 %v971
        %v1039 = vpop.f32.mrb[0].mxu0
        %v1040 = vadd.f32 0.0, %v1039
        %v1041 = vpop.f32.mrb[0].mxu0
        %v1042 = vpop.f32.mrb[0].mxu0
        %v1043 = vadd.f32 0.0, %v1042
        %v1044 = vpop.f32.mrb[0].mxu0
        %1045 = vdwg.mxu0
        %v1046 = vadd.f32 %v923, %v1008
        %v1047 = vadd.f32 %v924, %v1011
        %v1048 = vadd.f32 %v925, %v1016
        %v1049 = vadd.f32 %v926, %v1019
        %v1050 = vadd.f32 %v927, %v1024
        %v1051 = vadd.f32 %v928, %v1027
        %v1052 = vadd.f32 %v929, %v1032
        %v1053 = vadd.f32 %v930, %v1035
        %v1054 = vadd.f32 %v931, %v1040
        %v1055 = vadd.f32 %v932, %v1043
        %v1056 = vld [vmem:[%s206 + $0x8] sm:$0xc]
        %v1057 = vld [vmem:[%s206 + $0xc] sm:$0xf]
        %v1058 = vld [vmem:[%s206 + $0x10] sm:$0xf]
        %v1059 = vld [vmem:[%s206 + $0x14] sm:$0xf]
        %v1060 = vld [vmem:[%s206 + $0x18] sm:$0xf]
        %v1061 = vld [vmem:[%s206 + $0x1c] sm:$0xf]
        %v1062 = vld [vmem:[%s206 + $0x20] sm:$0xf]
        %v1063 = vld [vmem:[%s206 + $0x24] sm:$0xf]
        %v1064 = vld [vmem:[%s206 + $0x28] sm:$0xf]
        %v1065 = vld [vmem:[%s206 + $0x2c] sm:$0xf]
        %v1066 = vld [vmem:[%s206 + $0x30] sm:$0x3]
        %s1067 = scalar_lea.vmem %s210, 48
        %v1068 = vld [vmem:[%s1067] sm:$0xf]
        %v1069 = vld [vmem:[%s1067 + $0x4] sm:$0xf]
        %v1081 = vunpack.c.l.b16 %v1056
        %v1082 = vunpack.c.l.b16 %v1057
        %v1083 = vunpack.c.l.b16 %v1058
        %v1084 = vunpack.c.l.b16 %v1059
        %v1085 = vunpack.c.l.b16 %v1060
        %v1086 = vunpack.c.l.b16 %v1061
        %v1087 = vunpack.c.l.b16 %v1062
        %v1088 = vunpack.c.l.b16 %v1063
        %v1089 = vunpack.c.l.b16 %v1064
        %v1090 = vunpack.c.l.b16 %v1065
        %v1091 = vunpack.c.l.b16 %v1066
        %v1092 = vpack.c.b16 %v1082, %v1081
        %v1093 = vpack.c.b16 %v1084, %v1083
        %v1094 = vpack.c.b16 %v1086, %v1085
        %v1095 = vpack.c.b16 %v1088, %v1087
        %v1096 = vpack.c.b16 %v1090, %v1089
        %v1097 = vpack.c.b16 %v1091, %v1091
        %v1098 = vrot.slane %v1092, 2
        %v1099 = vrot.slane %v1093, 2
        %v1100 = vsel %vm940, %v1098, %v1099
        %v1101 = vrot.slane %v1094, 2
        %v1102 = vsel %vm940, %v1099, %v1101
        %v1103 = vrot.slane %v1095, 2
        %v1104 = vsel %vm940, %v1101, %v1103
        %v1105 = vrot.slane %v1096, 2
        %v1106 = vsel %vm940, %v1103, %v1105
        %v1107 = vrot.slane %v1097, 2
        %v1108 = vsel %vm940, %v1105, %v1107
        %v1111 = vunpack.c.l.b16 %v1068
        %v1112 = vunpack.c.l.b16 %v1069
        %v1113 = vpack.c.b16 %v1112, %v1111
        %v1116 = vsel %vm310, %v1100, 0
        %v1119 = vsel %vm310, %v1102, 0
        %v1122 = vsel %vm310, %v1104, 0
        %v1125 = vsel %vm310, %v1106, 0
        %v1128 = vsel %vm310, %v1108, 0
        %1130 = vmatprep.subr.bf16.mxu0 0
        %1131 = vmatpush1.bf16.msra.mxu0 %v1113
        %1132 = vmatprep.subr.bf16.mxu0 0
        %1133 = vmatpush1.bf16.msra.mxu0 0
        %1134 = vmatprep.subr.bf16.mxu0 0
        %1135 = vmatpush1.bf16.msra.mxu0 0
        %1136 = vmatprep.subr.bf16.mxu0 0
        %1137 = vmatpush1.bf16.msra.mxu0 0
        %1138 = vmatprep.subr.bf16.mxu0 0
        %1139 = vmatpush1.bf16.msra.mxu0 0
        %1140 = vmatprep.subr.bf16.mxu0 0
        %1141 = vmatpush1.bf16.msra.mxu0 0
        %1142 = vmatprep.subr.bf16.mxu0 0
        %1143 = vmatpush1.bf16.msra.mxu0 0
        %1144 = vmatprep.subr.bf16.mxu0 0
        %1145 = vmatpush1.bf16.msra.mxu0 0
        %1146 = vmatprep.subr.bf16.mxu0 0
        %1147 = vmatpush1.bf16.msra.mxu0 0
        %1148 = vmatprep.subr.bf16.mxu0 0
        %1149 = vmatpush1.bf16.msra.mxu0 0
        %1150 = vmatprep.subr.bf16.mxu0 0
        %1151 = vmatpush1.bf16.msra.mxu0 0
        %1152 = vmatprep.subr.bf16.mxu0 0
        %1153 = vmatpush1.bf16.msra.mxu0 0
        %1154 = vmatprep.subr.bf16.mxu0 0
        %1155 = vmatpush1.bf16.msra.mxu0 0
        %1156 = vmatprep.subr.bf16.mxu0 0
        %1157 = vmatpush1.bf16.msra.mxu0 0
        %1158 = vmatprep.subr.bf16.mxu0 0
        %1159 = vmatpush1.bf16.msra.mxu0 0
        %1160 = vmatprep.subr.bf16.mxu0 0
        %1161 = vmatpush1.bf16.msra.mxu0 0
        %1162 = vmatprep.mubr.bf16.mxu0 0
        %1163 = vmatmul.mubr.bf16.gmra.mrb[0].mxu0 %v1116
        %v1164 = vpop.f32.mrb[0].mxu0
        %v1165 = vadd.f32 0.0, %v1164
        %v1166 = vpop.f32.mrb[0].mxu0
        %v1167 = vpop.f32.mrb[0].mxu0
        %v1168 = vadd.f32 0.0, %v1167
        %v1169 = vpop.f32.mrb[0].mxu0
        %1170 = vmatprep.mubr.bf16.mxu0 0
        %1171 = vmatmul.mubr.bf16.gmra.mrb[0].mxu0 %v1119
        %v1172 = vpop.f32.mrb[0].mxu0
        %v1173 = vadd.f32 0.0, %v1172
        %v1174 = vpop.f32.mrb[0].mxu0
        %v1175 = vpop.f32.mrb[0].mxu0
        %v1176 = vadd.f32 0.0, %v1175
        %v1177 = vpop.f32.mrb[0].mxu0
        %1178 = vmatprep.mubr.bf16.mxu0 0
        %1179 = vmatmul.mubr.bf16.gmra.mrb[0].mxu0 %v1122
        %v1180 = vpop.f32.mrb[0].mxu0
        %v1181 = vadd.f32 0.0, %v1180
        %v1182 = vpop.f32.mrb[0].mxu0
        %v1183 = vpop.f32.mrb[0].mxu0
        %v1184 = vadd.f32 0.0, %v1183
        %v1185 = vpop.f32.mrb[0].mxu0
        %1186 = vmatprep.mubr.bf16.mxu0 0
        %1187 = vmatmul.mubr.bf16.gmra.mrb[0].mxu0 %v1125
        %v1188 = vpop.f32.mrb[0].mxu0
        %v1189 = vadd.f32 0.0, %v1188
        %v1190 = vpop.f32.mrb[0].mxu0
        %v1191 = vpop.f32.mrb[0].mxu0
        %v1192 = vadd.f32 0.0, %v1191
        %v1193 = vpop.f32.mrb[0].mxu0
        %1194 = vmatprep.mubr.bf16.mxu0 0
        %1195 = vmatmul.mubr.bf16.gmra.mrb[0].mxu0 %v1128
        %v1196 = vpop.f32.mrb[0].mxu0
        %v1197 = vadd.f32 0.0, %v1196
        %v1198 = vpop.f32.mrb[0].mxu0
        %v1199 = vpop.f32.mrb[0].mxu0
        %v1200 = vadd.f32 0.0, %v1199
        %v1201 = vpop.f32.mrb[0].mxu0
        %1202 = vdwg.mxu0
        %v1203 = vadd.f32 %v1046, %v1165
        %v1204 = vadd.f32 %v1047, %v1168
        %v1205 = vadd.f32 %v1048, %v1173
        %v1206 = vadd.f32 %v1049, %v1176
        %v1207 = vadd.f32 %v1050, %v1181
        %v1208 = vadd.f32 %v1051, %v1184
        %v1209 = vadd.f32 %v1052, %v1189
        %v1210 = vadd.f32 %v1053, %v1192
        %v1211 = vadd.f32 %v1054, %v1197
        %v1212 = vadd.f32 %v1055, %v1200
        %v1213 = vld [vmem:[%s206 + $0x30] sm:$0x7]
        %s1214 = scalar_lea.vmem %s210, 56
        %v1215 = vld [vmem:[%s1214] sm:$0xf]
        %v1216 = vld [vmem:[%s1214 + $0x4] sm:$0xf]
        %v1218 = vunpack.c.l.b16 %v1213
        %v1219 = vpack.c.b16 %v1218, %v1218
        %vm1220 = vsmask.f32 5376
        %v1222 = vshrl.u32 %v1092, 16
        %v1224 = vrot.slane %v1222, 2
        %v1225 = vshll.u32 %v1092, 16
        %v1227 = vrot.slane %v1225, 3
        %v1228 = vor.u32 %v1224, %v1227
        %v1230 = vshrl.u32 %v1093, 16
        %v1232 = vrot.slane %v1230, 2
        %v1233 = vshll.u32 %v1093, 16
        %v1235 = vrot.slane %v1233, 3
        %v1236 = vor.u32 %v1232, %v1235
        %v1237 = vsel %vm1220, %v1228, %v1236
        %v1239 = vshrl.u32 %v1094, 16
        %v1241 = vrot.slane %v1239, 2
        %v1242 = vshll.u32 %v1094, 16
        %v1244 = vrot.slane %v1242, 3
        %v1245 = vor.u32 %v1241, %v1244
        %v1246 = vsel %vm1220, %v1236, %v1245
        %v1248 = vshrl.u32 %v1095, 16
        %v1250 = vrot.slane %v1248, 2
        %v1251 = vshll.u32 %v1095, 16
        %v1253 = vrot.slane %v1251, 3
        %v1254 = vor.u32 %v1250, %v1253
        %v1255 = vsel %vm1220, %v1245, %v1254
        %v1257 = vshrl.u32 %v1096, 16
        %v1259 = vrot.slane %v1257, 2
        %v1260 = vshll.u32 %v1096, 16
        %v1262 = vrot.slane %v1260, 3
        %v1263 = vor.u32 %v1259, %v1262
        %v1264 = vsel %vm1220, %v1254, %v1263
        %v1266 = vshrl.u32 %v1219, 16
        %v1268 = vrot.slane %v1266, 2
        %v1269 = vshll.u32 %v1219, 16
        %v1271 = vrot.slane %v1269, 3
        %v1272 = vor.u32 %v1268, %v1271
        %v1273 = vsel %vm1220, %v1263, %v1272
        %v1276 = vunpack.c.l.b16 %v1215
        %v1277 = vunpack.c.l.b16 %v1216
        %v1278 = vpack.c.b16 %v1277, %v1276
        %v1281 = vsel %vm310, %v1237, 0
        %v1284 = vsel %vm310, %v1246, 0
        %v1287 = vsel %vm310, %v1255, 0
        %v1290 = vsel %vm310, %v1264, 0
        %v1293 = vsel %vm310, %v1273, 0
        %1295 = vmatprep.subr.bf16.mxu0 0
        %1296 = vmatpush1.bf16.msra.mxu0 %v1278
        %1297 = vmatprep.subr.bf16.mxu0 0
        %1298 = vmatpush1.bf16.msra.mxu0 0
        %1299 = vmatprep.subr.bf16.mxu0 0
        %1300 = vmatpush1.bf16.msra.mxu0 0
        %1301 = vmatprep.subr.bf16.mxu0 0
        %1302 = vmatpush1.bf16.msra.mxu0 0
        %1303 = vmatprep.subr.bf16.mxu0 0
        %1304 = vmatpush1.bf16.msra.mxu0 0
        %1305 = vmatprep.subr.bf16.mxu0 0
        %1306 = vmatpush1.bf16.msra.mxu0 0
        %1307 = vmatprep.subr.bf16.mxu0 0
        %1308 = vmatpush1.bf16.msra.mxu0 0
        %1309 = vmatprep.subr.bf16.mxu0 0
        %1310 = vmatpush1.bf16.msra.mxu0 0
        %1311 = vmatprep.subr.bf16.mxu0 0
        %1312 = vmatpush1.bf16.msra.mxu0 0
        %1313 = vmatprep.subr.bf16.mxu0 0
        %1314 = vmatpush1.bf16.msra.mxu0 0
        %1315 = vmatprep.subr.bf16.mxu0 0
        %1316 = vmatpush1.bf16.msra.mxu0 0
        %1317 = vmatprep.subr.bf16.mxu0 0
        %1318 = vmatpush1.bf16.msra.mxu0 0
        %1319 = vmatprep.subr.bf16.mxu0 0
        %1320 = vmatpush1.bf16.msra.mxu0 0
        %1321 = vmatprep.subr.bf16.mxu0 0
        %1322 = vmatpush1.bf16.msra.mxu0 0
        %1323 = vmatprep.subr.bf16.mxu0 0
        %1324 = vmatpush1.bf16.msra.mxu0 0
        %1325 = vmatprep.subr.bf16.mxu0 0
        %1326 = vmatpush1.bf16.msra.mxu0 0
        %1327 = vmatprep.mubr.bf16.mxu0 0
        %1328 = vmatmul.mubr.bf16.gmra.mrb[0].mxu0 %v1281
        %v1329 = vpop.f32.mrb[0].mxu0
        %v1330 = vadd.f32 0.0, %v1329
        %v1331 = vpop.f32.mrb[0].mxu0
        %v1332 = vpop.f32.mrb[0].mxu0
        %v1333 = vadd.f32 0.0, %v1332
        %v1334 = vpop.f32.mrb[0].mxu0
        %1335 = vmatprep.mubr.bf16.mxu0 0
        %1336 = vmatmul.mubr.bf16.gmra.mrb[0].mxu0 %v1284
        %v1337 = vpop.f32.mrb[0].mxu0
        %v1338 = vadd.f32 0.0, %v1337
        %v1339 = vpop.f32.mrb[0].mxu0
        %v1340 = vpop.f32.mrb[0].mxu0
        %v1341 = vadd.f32 0.0, %v1340
        %v1342 = vpop.f32.mrb[0].mxu0
        %1343 = vmatprep.mubr.bf16.mxu0 0
        %1344 = vmatmul.mubr.bf16.gmra.mrb[0].mxu0 %v1287
        %v1345 = vpop.f32.mrb[0].mxu0
        %v1346 = vadd.f32 0.0, %v1345
        %v1347 = vpop.f32.mrb[0].mxu0
        %v1348 = vpop.f32.mrb[0].mxu0
        %v1349 = vadd.f32 0.0, %v1348
        %v1350 = vpop.f32.mrb[0].mxu0
        %1351 = vmatprep.mubr.bf16.mxu0 0
        %1352 = vmatmul.mubr.bf16.gmra.mrb[0].mxu0 %v1290
        %v1353 = vpop.f32.mrb[0].mxu0
        %v1354 = vadd.f32 0.0, %v1353
        %v1355 = vpop.f32.mrb[0].mxu0
        %v1356 = vpop.f32.mrb[0].mxu0
        %v1357 = vadd.f32 0.0, %v1356
        %v1358 = vpop.f32.mrb[0].mxu0
        %1359 = vmatprep.mubr.bf16.mxu0 0
        %1360 = vmatmul.mubr.bf16.gmra.mrb[0].mxu0 %v1293
        %v1361 = vpop.f32.mrb[0].mxu0
        %v1362 = vadd.f32 0.0, %v1361
        %v1363 = vpop.f32.mrb[0].mxu0
        %v1364 = vpop.f32.mrb[0].mxu0
        %v1365 = vadd.f32 0.0, %v1364
        %v1366 = vpop.f32.mrb[0].mxu0
        %1367 = vdwg.mxu0
        %v1368 = vadd.f32 %v1203, %v1330
        %v1369 = vadd.f32 %v1204, %v1333
        %v1370 = vadd.f32 %v1205, %v1338
        %v1371 = vadd.f32 %v1206, %v1341
        %v1372 = vadd.f32 %v1207, %v1346
        %v1373 = vadd.f32 %v1208, %v1349
        %v1374 = vadd.f32 %v1209, %v1354
        %v1375 = vadd.f32 %v1210, %v1357
        %v1376 = vadd.f32 %v1211, %v1362
        %v1377 = vadd.f32 %v1212, %v1365
        %v1378 = vld [vmem:[%s206 + $0x8] sm:$0x8]
        %s1379 = scalar_lea.vmem %s210, 64
        %v1380 = vld [vmem:[%s1379] sm:$0xf]
        %v1381 = vld [vmem:[%s1379 + $0x4] sm:$0xf]
        %v1383 = vunpack.c.l.b16 %v1378
        %v1384 = vpack.c.b16 %v1082, %v1383
        %vm1385 = vcmask 1044480
        %v1386 = vrot.slane %v1384, 3
        %v1387 = vrot.slane %v1093, 3
        %v1388 = vsel %vm1385, %v1386, %v1387
        %v1389 = vrot.slane %v1094, 3
        %v1390 = vsel %vm1385, %v1387, %v1389
        %v1391 = vrot.slane %v1095, 3
        %v1392 = vsel %vm1385, %v1389, %v1391
        %v1393 = vrot.slane %v1096, 3
        %v1394 = vsel %vm1385, %v1391, %v1393
        %v1395 = vrot.slane %v1219, 3
        %v1396 = vsel %vm1385, %v1393, %v1395
        %v1399 = vunpack.c.l.b16 %v1380
        %v1400 = vunpack.c.l.b16 %v1381
        %v1401 = vpack.c.b16 %v1400, %v1399
        %v1404 = vsel %vm310, %v1388, 0
        %v1407 = vsel %vm310, %v1390, 0
        %v1410 = vsel %vm310, %v1392, 0
        %v1413 = vsel %vm310, %v1394, 0
        %v1416 = vsel %vm310, %v1396, 0
        %1418 = vmatprep.subr.bf16.mxu0 0
        %1419 = vmatpush1.bf16.msra.mxu0 %v1401
        %1420 = vmatprep.subr.bf16.mxu0 0
        %1421 = vmatpush1.bf16.msra.mxu0 0
        %1422 = vmatprep.subr.bf16.mxu0 0
        %1423 = vmatpush1.bf16.msra.mxu0 0
        %1424 = vmatprep.subr.bf16.mxu0 0
        %1425 = vmatpush1.bf16.msra.mxu0 0
        %1426 = vmatprep.subr.bf16.mxu0 0
        %1427 = vmatpush1.bf16.msra.mxu0 0
        %1428 = vmatprep.subr.bf16.mxu0 0
        %1429 = vmatpush1.bf16.msra.mxu0 0
        %1430 = vmatprep.subr.bf16.mxu0 0
        %1431 = vmatpush1.bf16.msra.mxu0 0
        %1432 = vmatprep.subr.bf16.mxu0 0
        %1433 = vmatpush1.bf16.msra.mxu0 0
        %1434 = vmatprep.subr.bf16.mxu0 0
        %1435 = vmatpush1.bf16.msra.mxu0 0
        %1436 = vmatprep.subr.bf16.mxu0 0
        %1437 = vmatpush1.bf16.msra.mxu0 0
        %1438 = vmatprep.subr.bf16.mxu0 0
        %1439 = vmatpush1.bf16.msra.mxu0 0
        %1440 = vmatprep.subr.bf16.mxu0 0
        %1441 = vmatpush1.bf16.msra.mxu0 0
        %1442 = vmatprep.subr.bf16.mxu0 0
        %1443 = vmatpush1.bf16.msra.mxu0 0
        %1444 = vmatprep.subr.bf16.mxu0 0
        %1445 = vmatpush1.bf16.msra.mxu0 0
        %1446 = vmatprep.subr.bf16.mxu0 0
        %1447 = vmatpush1.bf16.msra.mxu0 0
        %1448 = vmatprep.subr.bf16.mxu0 0
        %1449 = vmatpush1.bf16.msra.mxu0 0
        %1450 = vmatprep.mubr.bf16.mxu0 0
        %1451 = vmatmul.mubr.bf16.gmra.mrb[0].mxu0 %v1404
        %v1452 = vpop.f32.mrb[0].mxu0
        %v1453 = vadd.f32 0.0, %v1452
        %v1454 = vpop.f32.mrb[0].mxu0
        %v1455 = vpop.f32.mrb[0].mxu0
        %v1456 = vadd.f32 0.0, %v1455
        %v1457 = vpop.f32.mrb[0].mxu0
        %1458 = vmatprep.mubr.bf16.mxu0 0
        %1459 = vmatmul.mubr.bf16.gmra.mrb[0].mxu0 %v1407
        %v1460 = vpop.f32.mrb[0].mxu0
        %v1461 = vadd.f32 0.0, %v1460
        %v1462 = vpop.f32.mrb[0].mxu0
        %v1463 = vpop.f32.mrb[0].mxu0
        %v1464 = vadd.f32 0.0, %v1463
        %v1465 = vpop.f32.mrb[0].mxu0
        %1466 = vmatprep.mubr.bf16.mxu0 0
        %1467 = vmatmul.mubr.bf16.gmra.mrb[0].mxu0 %v1410
        %v1468 = vpop.f32.mrb[0].mxu0
        %v1469 = vadd.f32 0.0, %v1468
        %v1470 = vpop.f32.mrb[0].mxu0
        %v1471 = vpop.f32.mrb[0].mxu0
        %v1472 = vadd.f32 0.0, %v1471
        %v1473 = vpop.f32.mrb[0].mxu0
        %1474 = vmatprep.mubr.bf16.mxu0 0
        %1475 = vmatmul.mubr.bf16.gmra.mrb[0].mxu0 %v1413
        %v1476 = vpop.f32.mrb[0].mxu0
        %v1477 = vadd.f32 0.0, %v1476
        %v1478 = vpop.f32.mrb[0].mxu0
        %v1479 = vpop.f32.mrb[0].mxu0
        %v1480 = vadd.f32 0.0, %v1479
        %v1481 = vpop.f32.mrb[0].mxu0
        %1482 = vmatprep.mubr.bf16.mxu0 0
        %1483 = vmatmul.mubr.bf16.gmra.mrb[0].mxu0 %v1416
        %v1484 = vpop.f32.mrb[0].mxu0
        %v1485 = vadd.f32 0.0, %v1484
        %v1486 = vpop.f32.mrb[0].mxu0
        %v1487 = vpop.f32.mrb[0].mxu0
        %v1488 = vadd.f32 0.0, %v1487
        %v1489 = vpop.f32.mrb[0].mxu0
        %1490 = vdwg.mxu0
        %v1491 = vadd.f32 %v1368, %v1453
        %v1492 = vadd.f32 %v1369, %v1456
        %v1493 = vadd.f32 %v1370, %v1461
        %v1494 = vadd.f32 %v1371, %v1464
        %v1495 = vadd.f32 %v1372, %v1469
        %v1496 = vadd.f32 %v1373, %v1472
        %v1497 = vadd.f32 %v1374, %v1477
        %v1498 = vadd.f32 %v1375, %v1480
        %v1499 = vadd.f32 %v1376, %v1485
        %v1500 = vadd.f32 %v1377, %v1488
        %v1501 = vld [vmem:[%s213] sm:$0x1]
        %v1503 = vlaneseq
        %v1504 = vshrl.u32 %v1503, 7
        %v1505 = vsub.s32 0, %v1504
        %v1506 = vrot.slane %v1501, %v1505
        %v1508 = vadd.f32 %v1491, %v1506
        %v1509 = vadd.f32 %v1492, %v1506
        %v1510 = vadd.f32 %v1493, %v1506
        %v1511 = vadd.f32 %v1494, %v1506
        %v1512 = vadd.f32 %v1495, %v1506
        %v1513 = vadd.f32 %v1496, %v1506
        %v1514 = vadd.f32 %v1497, %v1506
        %v1515 = vadd.f32 %v1498, %v1506
        %v1516 = vadd.f32 %v1499, %v1506
        %v1517 = vadd.f32 %v1500, %v1506
        %vm1518 = vcmp.gt.f32.partialorder %v1508, 0.0
        %vm1519 = vcmp.gt.f32.partialorder %v1509, 0.0
        %vm1520 = vcmp.gt.f32.partialorder %v1510, 0.0
        %vm1521 = vcmp.gt.f32.partialorder %v1511, 0.0
        %vm1522 = vcmp.gt.f32.partialorder %v1512, 0.0
        %vm1523 = vcmp.gt.f32.partialorder %v1513, 0.0
        %vm1524 = vcmp.gt.f32.partialorder %v1514, 0.0
        %vm1525 = vcmp.gt.f32.partialorder %v1515, 0.0
        %vm1526 = vcmp.gt.f32.partialorder %v1516, 0.0
        %vm1527 = vcmp.gt.f32.partialorder %v1517, 0.0
        %v1528 = vmul.f32 %v1508, 0.2
        %v1529 = vmul.f32 %v1509, 0.2
        %v1530 = vmul.f32 %v1510, 0.2
        %v1531 = vmul.f32 %v1511, 0.2
        %v1532 = vmul.f32 %v1512, 0.2
        %v1533 = vmul.f32 %v1513, 0.2
        %v1534 = vmul.f32 %v1514, 0.2
        %v1535 = vmul.f32 %v1515, 0.2
        %v1536 = vmul.f32 %v1516, 0.2
        %v1537 = vmul.f32 %v1517, 0.2
        %v1538 = vsel %vm1518, %v1508, %v1528
        %v1539 = vsel %vm1519, %v1509, %v1529
        %v1540 = vsel %vm1520, %v1510, %v1530
        %v1541 = vsel %vm1521, %v1511, %v1531
        %v1542 = vsel %vm1522, %v1512, %v1532
        %v1543 = vsel %vm1523, %v1513, %v1533
        %v1544 = vsel %vm1524, %v1514, %v1534
        %v1545 = vsel %vm1525, %v1515, %v1535
        %v1546 = vsel %vm1526, %v1516, %v1536
        %v1547 = vsel %vm1527, %v1517, %v1537
        %1548 = vst [vmem:[%s201] sm:$0xff] %v1538
        %1549 = vst [vmem:[%s201 + $0x8] sm:$0xff] %v1539
        %1550 = vst [vmem:[%s201 + $0x10] sm:$0xff] %v1540
        %1551 = vst [vmem:[%s201 + $0x18] sm:$0xff] %v1541
        %1552 = vst [vmem:[%s201 + $0x20] sm:$0xff] %v1542
        %1553 = vst [vmem:[%s201 + $0x28] sm:$0xff] %v1543
        %1554 = vst [vmem:[%s201 + $0x30] sm:$0xff] %v1544
        %1555 = vst [vmem:[%s201 + $0x38] sm:$0xff] %v1545
        %1556 = vst [vmem:[%s201 + $0x40] sm:$0xff] %v1546
        %1557 = vst [vmem:[%s201 + $0x48] sm:$0xff] %v1547
        %s1558 = sand.u32 %s117, 1
        %s1559 = scalar_lea.sflag [#allocation3], %s1558
        %s1560 = sand.u32 %s117, 1
        %s1561 = smul.addr %s1560, 80
        %s1562 = scalar_lea.vmem [#allocation2], %s1561
        // Predicated region
        $region33: #{tpu_custom_call.1} parent=31 // pred_check
          %p1563 = pneg %p127
        $region34: #{tpu_custom_call.1} parent=31 // pred_check_branch
          %1565 = sbr.rel (%p1563) target = $region36
        $region35: #{tpu_custom_call.1} parent=31 // pred_region
          %s1567 = ssub.s32 1280, 1280
          %1568 = vsyncadd %s1559, %s1567
          %s1569 = smul.addr %s21, 10
          %s1570 = sadd.s32 %s22, %s1569
          %s1571 = smul.addr %s1570, 128
          %s1572 = scalar_lea.hbm %s3, %s1571
          %s1573 = sshll.u32 %s1562, 4
          %s1574 = int_to_ptr.vmem [resolvable:$true] %s1573
          %1579 = dma.vmem_to_hbm [thread:$0]  %s1574, 1280, %s1572, %s1559, 128, 128, 8
        $region36: #{tpu_custom_call.1} parent=31 // pred_fallthru
          _
      $region32: #{tpu_custom_call.1} parent=5 // pred_fallthru
        _
      %p1580 = scmp.le.s32.totalorder 2, %s12
      // Predicated region
      $region37: #{tpu_custom_call.1} parent=5 // pred_check
        %p1581 = pneg %p1580
      $region38: #{tpu_custom_call.1} parent=5 // pred_check_branch
        %1583 = sbr.rel (%p1581) target = $region40
      $region39: #{tpu_custom_call.1} parent=5 // pred_region
        %s1584 = ssub.s32 %s12, 2
        // Predicated region
        $region41: #{tpu_custom_call.1} parent=39 // pred_check
          %p1585 = pneg %p133
        $region42: #{tpu_custom_call.1} parent=39 // pred_check_branch
          %1587 = sbr.rel (%p1585) target = $region44
        $region43: #{tpu_custom_call.1} parent=39 // pred_region
          %s1588 = sand.u32 %s118, 1
          %s1589 = scalar_lea.sflag [#allocation3], %s1588
          %s1590 = sand.u32 %s118, 1
          %s1591 = smul.addr %s1590, 80
          %s1592 = scalar_lea.vmem [#allocation2], %s1591
          %1593 = dma.done %s1589, 1280
        $region44: #{tpu_custom_call.1} parent=39 // pred_fallthru
          _
      $region40: #{tpu_custom_call.1} parent=5 // pred_fallthru
        _
    $region6: #{tpu_custom_call.1} parent=1 // loop_footer
      %s16 = sadd.s32 1, %s12
    $region7: #{tpu_custom_call.1} parent=1 // loop_footer_branch
      %11 = sbr.rel target = $region3
    $region8: #{tpu_custom_call.1} parent=1 // loop_exit
      _
    %1594 = vsyncpa [#allocation3], 1
    %s1595 = scalar_lea.sflag [#allocation3], 1
    %1596 = vsyncpa %s1595, 1

</llo_original>
